<compile_context>
chip_gen: v6e
topology: v6e:2x2x1
jax: 0.10.0
libtpu: 0.0.40
codegen_flags: <defaults>
</compile_context>

<pallas_src>
import functools

import jax
import jax.numpy as jnp
from jax.experimental import pallas as pl
from jax.experimental.pallas import tpu as pltpu


def _softplus(x):
    # numerically stable softplus(x) = max(x,0) + log(1 + exp(-|x|))  (f32, EUP path)
    return jnp.maximum(x, 0.0) + jnp.log(1.0 + jnp.exp(-jnp.abs(x)))


def _round_up(x, m):
    return ((x + m - 1) // m) * m


def _ensemble_kernel(num_nets, state_dim, h1,
                     x_ref,
                     w1c_ref, b1c_ref,
                     w2_ref, b2_ref,
                     w3_ref, b3_ref,
                     w4_ref, b4_ref,
                     maxlv_ref, minlv_ref,
                     out_ref):
    x = x_ref[...]                      # (tb, D) bf16 (already cast in the wrapper)

    max_lv = maxlv_ref[...]             # (1, 2*state_dim) f32 (bounds tiled to full width)
    min_lv = minlv_ref[...]             # (1, 2*state_dim) f32

    tb = x_ref.shape[0]
    two_s = 2 * state_dim
    col = jax.lax.broadcasted_iota(jnp.int32, (tb, two_s), 1)
    is_var = col >= state_dim           # upper half of each net's slab = raw log-variance

    # ---- Layer 1 fused across all nets: one wide matmul on the shared input. ----
    h_all = jnp.dot(x, w1c_ref[...], preferred_element_type=jnp.float32) + b1c_ref[...]
    h_all = jnp.maximum(h_all, 0.0).astype(jnp.bfloat16)   # (tb, num_nets*H1)

    # ---- Static unroll over ensemble members (all weights VMEM-resident). ----
    for n in range(num_nets):
        h = h_all[:, n * h1:(n + 1) * h1]                                  # (tb, H1) bf16
        h = jnp.dot(h, w2_ref[n], preferred_element_type=jnp.float32) + b2_ref[n]
        h = jnp.maximum(h, 0.0).astype(jnp.bfloat16)
        h = jnp.dot(h, w3_ref[n], preferred_element_type=jnp.float32) + b3_ref[n]
        h = jnp.maximum(h, 0.0).astype(jnp.bfloat16)
        out = jnp.dot(h, w4_ref[n], preferred_element_type=jnp.float32) + b4_ref[n]

        # logvar clamp (computed full-width, applied only to the logvar half; f32)
        lv = max_lv - _softplus(max_lv - out)
        lv = min_lv + _softplus(lv - min_lv)

        # Write this net's slab directly into its static column range of the
        # lane-dense output block; the HBM writeback is a single wide DMA per tile.
        out_ref[:, n * two_s:(n + 1) * two_s] = jnp.where(is_var, lv, out)


def ensemble_forward(x, params, max_logvar, min_logvar, *, batch_tile=256):
    """x: (B, state_dim+action_dim).  params: list of (W, b) pairs stacked over nets.
    Returns (means, logvars), each (num_nets, B, state_dim), float32."""
    (w1, b1), (w2, b2), (w3, b3), (w4, b4) = params
    num_nets, D, H1 = w1.shape
    H2, H3 = w2.shape[2], w3.shape[2]
    two_s = w4.shape[2]
    state_dim = two_s // 2
    B = x.shape[0]
    out_w = num_nets * two_s

    # Layer-1 weights fused across nets (output dim concatenation); bf16 weights.
    w1c = jnp.transpose(w1, (1, 0, 2)).reshape(D, num_nets * H1).astype(jnp.bfloat16)
    b1c = b1.reshape(1, num_nets * H1).astype(jnp.float32)
    w2b, w3b, w4b = (w.astype(jnp.bfloat16) for w in (w2, w3, w4))
    b2r, b3r, b4r = (b.reshape(num_nets, 1, -1).astype(jnp.float32) for b in (b2, b3, b4))

    # Tile the logvar bounds to full output width so the clamp math is lane-dense.
    maxlv_full = jnp.concatenate([max_logvar, max_logvar], axis=-1).astype(jnp.float32)
    minlv_full = jnp.concatenate([min_logvar, min_logvar], axis=-1).astype(jnp.float32)

    # Batch tiling: single "parallel" grid axis.  Guarantee >=2 tiles when B > 128
    # so v7x's two TensorCores both get work; tiles are 128-aligned.
    if B <= 128:
        tb = B
    else:
        tb = min(batch_tile, _round_up(pl.cdiv(B, 2), 128))
    b_pad = _round_up(B, tb)

    x = x.astype(jnp.bfloat16)          # halve x DMA bytes; MXU-native input dtype
    if b_pad != B:
        x = jnp.pad(x, ((0, b_pad - B), (0, 0)))

    # Explicit VMEM budget: resident weight set (double-buffer allowance) +
    # per-tile I/O + activation temporaries, clamped to v7x's 64 MiB physical.
    weight_bytes = sum(int(a.size) * a.dtype.itemsize
                       for a in (w1c, b1c, w2b, b2r, w3b, b3r, w4b, b4r,
                                 maxlv_full, minlv_full))
    tile_io_bytes = tb * D * 2 + tb * out_w * 4
    act_bytes = 4 * tb * max(num_nets * H1, H2, H3, out_w) * 4
    vmem_est = 2 * (weight_bytes + tile_io_bytes) + act_bytes + (4 << 20)
    vmem_limit = int(min(max(vmem_est, 32 << 20), 64 << 20))

    kernel = functools.partial(_ensemble_kernel, num_nets, state_dim, H1)

    grid_spec = pltpu.PrefetchScalarGridSpec(
        num_scalar_prefetch=0,
        grid=(b_pad // tb,),
        in_specs=[
            pl.BlockSpec((tb, D), lambda i: (i, 0)),                    # x batch tile (bf16)
            pl.BlockSpec((D, num_nets * H1), lambda i: (0, 0)),         # W1 fused (all nets)
            pl.BlockSpec((1, num_nets * H1), lambda i: (0, 0)),         # b1 fused
            pl.BlockSpec((num_nets, H1, H2), lambda i: (0, 0, 0)),      # W2
            pl.BlockSpec((num_nets, 1, H2), lambda i: (0, 0, 0)),       # b2
            pl.BlockSpec((num_nets, H2, H3), lambda i: (0, 0, 0)),      # W3
            pl.BlockSpec((num_nets, 1, H3), lambda i: (0, 0, 0)),       # b3
            pl.BlockSpec((num_nets, H3, two_s), lambda i: (0, 0, 0)),   # W4
            pl.BlockSpec((num_nets, 1, two_s), lambda i: (0, 0, 0)),    # b4
            pl.BlockSpec((1, two_s), lambda i: (0, 0)),                 # max_logvar (tiled)
            pl.BlockSpec((1, two_s), lambda i: (0, 0)),                 # min_logvar (tiled)
        ],
        out_specs=pl.BlockSpec((tb, out_w), lambda i: (i, 0)),          # merged lane-dense out
    )

    out = pl.pallas_call(
        kernel,
        out_shape=jax.ShapeDtypeStruct((b_pad, out_w), jnp.float32),
        grid_spec=grid_spec,
        compiler_params=pltpu.CompilerParams(
            dimension_semantics=("parallel",),      # batch tiles shard across v7x's 2 TCs
            vmem_limit_bytes=vmem_limit),
    )(x, w1c, b1c, w2b, b2r, w3b, b3r, w4b, b4r, maxlv_full, minlv_full)

    # Split / reorder outside the kernel (cheap XLA reshape+transpose).
    out = out[:B].reshape(B, num_nets, two_s).transpose(1, 0, 2)   # (num_nets, B, 2S)
    means = out[..., :state_dim]
    logvars = out[..., state_dim:]
    return means, logvars


def _init_linear(key, fan_in, fan_out, num_nets):
    # deterministic torch-style init: U(-1/sqrt(fan_in), 1/sqrt(fan_in))
    kw, kb = jax.random.split(key)
    bound = 1.0 / jnp.sqrt(jnp.float32(fan_in))
    w = jax.random.uniform(kw, (num_nets, fan_in, fan_out), jnp.float32, -bound, bound)
    b = jax.random.uniform(kb, (num_nets, fan_out), jnp.float32, -bound, bound)
    return w, b


def _reference_forward(x, params, max_logvar, min_logvar):
    # Mirrors the kernel's bf16 matmul inputs / f32 accumulation.
    (w1, b1), (w2, b2), (w3, b3), (w4, b4) = params
    state_dim = w4.shape[2] // 2

    def bdot(a, w):
        return jnp.dot(a.astype(jnp.bfloat16).astype(jnp.float32),
                       w.astype(jnp.bfloat16).astype(jnp.float32))

    means, logvars = [], []
    for n in range(w1.shape[0]):
        h = jax.nn.relu(bdot(x, w1[n]) + b1[n])
        h = jax.nn.relu(bdot(h, w2[n]) + b2[n])
        h = jax.nn.relu(bdot(h, w3[n]) + b3[n])
        out = bdot(h, w4[n]) + b4[n]
        mean = out[:, :state_dim]
        raw_v = out[:, state_dim:]
        lv = max_logvar - jax.nn.softplus(max_logvar - raw_v)
        lv = min_logvar + jax.nn.softplus(lv - min_logvar)
        means.append(mean)
        logvars.append(lv)
    return jnp.stack(means), jnp.stack(logvars)


if __name__ == "__main__":
    # small shapes consistent with the module (module default hidden is [400]*3;
    # kept small & lane-friendly for the demo)
    num_nets = 3
    state_dim = 4
    action_dim = 2
    hidden_units = [128, 128, 128]

    key = jax.random.PRNGKey(0)
    kx, k1, k2, k3, k4 = jax.random.split(key, 5)

    D = state_dim + action_dim
    sizes = [D, *hidden_units, 2 * state_dim]
    params = [
        _init_linear(k1, sizes[0], sizes[1], num_nets),
        _init_linear(k2, sizes[1], sizes[2], num_nets),
        _init_linear(k3, sizes[2], sizes[3], num_nets),
        _init_linear(k4, sizes[3], sizes[4], num_nets),
    ]

    # registered buffers from the module
    max_logvar = jnp.full((1, state_dim), -3.0, jnp.float32)
    min_logvar = jnp.full((1, state_dim), -7.0, jnp.float32)

    # --- case 1: tiny batch (single tile) ---
    B = 8
    x = jax.random.normal(kx, (B, D), jnp.float32)
    means, logvars = ensemble_forward(x, params, max_logvar, min_logvar)
    jax.block_until_ready((means, logvars))
    ref_means, ref_logvars = _reference_forward(x, params, max_logvar, min_logvar)
    assert means.shape == (num_nets, B, state_dim)
    assert logvars.shape == (num_nets, B, state_dim)
    assert jnp.allclose(means, ref_means, atol=1e-3, rtol=1e-3)
    assert jnp.allclose(logvars, ref_logvars, atol=1e-3, rtol=1e-3)

    # --- case 2: larger, unaligned batch (exercises multi-tile grid + padding) ---
    B2 = 300
    x2 = jax.random.normal(jax.random.PRNGKey(1), (B2, D), jnp.float32)
    means2, logvars2 = ensemble_forward(x2, params, max_logvar, min_logvar)
    jax.block_until_ready((means2, logvars2))
    ref_means2, ref_logvars2 = _reference_forward(x2, params, max_logvar, min_logvar)
    assert means2.shape == (num_nets, B2, state_dim)
    assert logvars2.shape == (num_nets, B2, state_dim)
    assert jnp.allclose(means2, ref_means2, atol=1e-3, rtol=1e-3)
    assert jnp.allclose(logvars2, ref_logvars2, atol=1e-3, rtol=1e-3)

    print("KERNEL_OK")
</pallas_src>

<mosaic_0001>
module attributes {stable_mosaic.version = 11 : i64} {
  func.func @_ensemble_kernel(%arg0: i32, %arg1: memref<8x6xbf16, #tpu.memory_space<vmem>>, %arg2: memref<6x384xbf16, #tpu.memory_space<vmem>>, %arg3: memref<1x384xf32, #tpu.memory_space<vmem>>, %arg4: memref<3x128x128xbf16, #tpu.memory_space<vmem>>, %arg5: memref<3x1x128xf32, #tpu.memory_space<vmem>>, %arg6: memref<3x128x128xbf16, #tpu.memory_space<vmem>>, %arg7: memref<3x1x128xf32, #tpu.memory_space<vmem>>, %arg8: memref<3x128x8xbf16, #tpu.memory_space<vmem>>, %arg9: memref<3x1x8xf32, #tpu.memory_space<vmem>>, %arg10: memref<1x8xf32, #tpu.memory_space<vmem>>, %arg11: memref<1x8xf32, #tpu.memory_space<vmem>>, %arg12: memref<8x24xf32, #tpu.memory_space<vmem>>) attributes {dimension_semantics = [#tpu.dimension_semantics<parallel>], iteration_bounds = array<i64: 1>, scalar_prefetch = 0 : i64, scratch_operands = 0 : i64, tpu.core_type = #tpu.core_type<tc>, window_params = [{transform_indices = @transform_0, window_bounds = array<i64: 8, 6>}, {pipeline_mode = #tpu.pipeline_mode<synchronous>, transform_indices = @transform_1, window_bounds = array<i64: 6, 384>}, {pipeline_mode = #tpu.pipeline_mode<synchronous>, transform_indices = @transform_2, window_bounds = array<i64: 1, 384>}, {pipeline_mode = #tpu.pipeline_mode<synchronous>, transform_indices = @transform_3, window_bounds = array<i64: 3, 128, 128>}, {pipeline_mode = #tpu.pipeline_mode<synchronous>, transform_indices = @transform_4, window_bounds = array<i64: 3, 1, 128>}, {pipeline_mode = #tpu.pipeline_mode<synchronous>, transform_indices = @transform_5, window_bounds = array<i64: 3, 128, 128>}, {pipeline_mode = #tpu.pipeline_mode<synchronous>, transform_indices = @transform_6, window_bounds = array<i64: 3, 1, 128>}, {pipeline_mode = #tpu.pipeline_mode<synchronous>, transform_indices = @transform_7, window_bounds = array<i64: 3, 128, 8>}, {pipeline_mode = #tpu.pipeline_mode<synchronous>, transform_indices = @transform_8, window_bounds = array<i64: 3, 1, 8>}, {pipeline_mode = #tpu.pipeline_mode<synchronous>, transform_indices = @transform_9, window_bounds = array<i64: 1, 8>}, {pipeline_mode = #tpu.pipeline_mode<synchronous>, transform_indices = @transform_10, window_bounds = array<i64: 1, 8>}, {transform_indices = @transform_11, window_bounds = array<i64: 8, 24>}]} {
    %c0 = arith.constant 0 : index
    %c0_0 = arith.constant 0 : index
    %0 = vector.load %arg1[%c0, %c0_0] : memref<8x6xbf16, #tpu.memory_space<vmem>>, vector<8x6xbf16>
    %c0_1 = arith.constant 0 : index
    %c0_2 = arith.constant 0 : index
    %1 = vector.load %arg10[%c0_1, %c0_2] : memref<1x8xf32, #tpu.memory_space<vmem>>, vector<1x8xf32>
    %c0_3 = arith.constant 0 : index
    %c0_4 = arith.constant 0 : index
    %2 = vector.load %arg11[%c0_3, %c0_4] : memref<1x8xf32, #tpu.memory_space<vmem>>, vector<1x8xf32>
    %3 = tpu.iota {dimensions = array<i32: 1>} : vector<8x8xi32>
    %c4_i32 = arith.constant 4 : i32
    %4 = vector.broadcast %c4_i32 : i32 to vector<8x8xi32>
    %5 = arith.cmpi sge, %3, %4 : vector<8x8xi32>
    %c0_5 = arith.constant 0 : index
    %c0_6 = arith.constant 0 : index
    %6 = vector.load %arg2[%c0_5, %c0_6] : memref<6x384xbf16, #tpu.memory_space<vmem>>, vector<6x384xbf16>
    %cst = arith.constant dense<0.000000e+00> : vector<8x384xf32>
    %7 = tpu.matmul %0, %6, %cst {dimension_numbers = #tpu.dot_dimension_numbers<[1], [0], [0], [1], [0, 0, 1, 1], [], []>} : vector<8x6xbf16>, vector<6x384xbf16>, vector<8x384xf32> -> vector<8x384xf32>
    %c0_7 = arith.constant 0 : index
    %c0_8 = arith.constant 0 : index
    %8 = vector.load %arg3[%c0_7, %c0_8] : memref<1x384xf32, #tpu.memory_space<vmem>>, vector<1x384xf32>
    %9 = vector.broadcast %8 : vector<1x384xf32> to vector<8x384xf32>
    %10 = arith.addf %7, %9 : vector<8x384xf32>
    %cst_9 = arith.constant 0.000000e+00 : f32
    %11 = vector.broadcast %cst_9 : f32 to vector<8x384xf32>
    %12 = arith.maximumf %10, %11 : vector<8x384xf32>
    %13 = arith.truncf %12 : vector<8x384xf32> to vector<8x384xbf16>
    %14 = vector.extract_strided_slice %13 {offsets = [0, 0], sizes = [8, 128], strides = [1, 1]} : vector<8x384xbf16> to vector<8x128xbf16>
    %c0_10 = arith.constant 0 : index
    %c0_11 = arith.constant 0 : index
    %c0_12 = arith.constant 0 : index
    %15 = vector.load %arg4[%c0_10, %c0_11, %c0_12] : memref<3x128x128xbf16, #tpu.memory_space<vmem>>, vector<1x128x128xbf16>
    %16 = vector.shape_cast %15 : vector<1x128x128xbf16> to vector<128x128xbf16>
    %cst_13 = arith.constant dense<0.000000e+00> : vector<8x128xf32>
    %17 = tpu.matmul %14, %16, %cst_13 {dimension_numbers = #tpu.dot_dimension_numbers<[1], [0], [0], [1], [0, 0, 1, 1], [], []>} : vector<8x128xbf16>, vector<128x128xbf16>, vector<8x128xf32> -> vector<8x128xf32>
    %c0_14 = arith.constant 0 : index
    %c0_15 = arith.constant 0 : index
    %c0_16 = arith.constant 0 : index
    %18 = vector.load %arg5[%c0_14, %c0_15, %c0_16] : memref<3x1x128xf32, #tpu.memory_space<vmem>>, vector<1x1x128xf32>
    %19 = vector.shape_cast %18 : vector<1x1x128xf32> to vector<1x128xf32>
    %20 = vector.broadcast %19 : vector<1x128xf32> to vector<8x128xf32>
    %21 = arith.addf %17, %20 : vector<8x128xf32>
    %cst_17 = arith.constant 0.000000e+00 : f32
    %22 = vector.broadcast %cst_17 : f32 to vector<8x128xf32>
    %23 = arith.maximumf %21, %22 : vector<8x128xf32>
    %24 = arith.truncf %23 : vector<8x128xf32> to vector<8x128xbf16>
    %c0_18 = arith.constant 0 : index
    %c0_19 = arith.constant 0 : index
    %c0_20 = arith.constant 0 : index
    %25 = vector.load %arg6[%c0_18, %c0_19, %c0_20] : memref<3x128x128xbf16, #tpu.memory_space<vmem>>, vector<1x128x128xbf16>
    %26 = vector.shape_cast %25 : vector<1x128x128xbf16> to vector<128x128xbf16>
    %cst_21 = arith.constant dense<0.000000e+00> : vector<8x128xf32>
    %27 = tpu.matmul %24, %26, %cst_21 {dimension_numbers = #tpu.dot_dimension_numbers<[1], [0], [0], [1], [0, 0, 1, 1], [], []>} : vector<8x128xbf16>, vector<128x128xbf16>, vector<8x128xf32> -> vector<8x128xf32>
    %c0_22 = arith.constant 0 : index
    %c0_23 = arith.constant 0 : index
    %c0_24 = arith.constant 0 : index
    %28 = vector.load %arg7[%c0_22, %c0_23, %c0_24] : memref<3x1x128xf32, #tpu.memory_space<vmem>>, vector<1x1x128xf32>
    %29 = vector.shape_cast %28 : vector<1x1x128xf32> to vector<1x128xf32>
    %30 = vector.broadcast %29 : vector<1x128xf32> to vector<8x128xf32>
    %31 = arith.addf %27, %30 : vector<8x128xf32>
    %cst_25 = arith.constant 0.000000e+00 : f32
    %32 = vector.broadcast %cst_25 : f32 to vector<8x128xf32>
    %33 = arith.maximumf %31, %32 : vector<8x128xf32>
    %34 = arith.truncf %33 : vector<8x128xf32> to vector<8x128xbf16>
    %c0_26 = arith.constant 0 : index
    %c0_27 = arith.constant 0 : index
    %c0_28 = arith.constant 0 : index
    %35 = vector.load %arg8[%c0_26, %c0_27, %c0_28] : memref<3x128x8xbf16, #tpu.memory_space<vmem>>, vector<1x128x8xbf16>
    %36 = vector.shape_cast %35 : vector<1x128x8xbf16> to vector<128x8xbf16>
    %cst_29 = arith.constant dense<0.000000e+00> : vector<8x8xf32>
    %37 = tpu.matmul %34, %36, %cst_29 {dimension_numbers = #tpu.dot_dimension_numbers<[1], [0], [0], [1], [0, 0, 1, 1], [], []>} : vector<8x128xbf16>, vector<128x8xbf16>, vector<8x8xf32> -> vector<8x8xf32>
    %c0_30 = arith.constant 0 : index
    %c0_31 = arith.constant 0 : index
    %c0_32 = arith.constant 0 : index
    %38 = vector.load %arg9[%c0_30, %c0_31, %c0_32] : memref<3x1x8xf32, #tpu.memory_space<vmem>>, vector<1x1x8xf32>
    %39 = vector.shape_cast %38 : vector<1x1x8xf32> to vector<1x8xf32>
    %40 = vector.broadcast %39 : vector<1x8xf32> to vector<8x8xf32>
    %41 = arith.addf %37, %40 : vector<8x8xf32>
    %42 = vector.broadcast %1 : vector<1x8xf32> to vector<8x8xf32>
    %43 = arith.subf %42, %41 : vector<8x8xf32>
    %cst_33 = arith.constant 0.000000e+00 : f32
    %44 = vector.broadcast %cst_33 : f32 to vector<8x8xf32>
    %45 = arith.maximumf %43, %44 : vector<8x8xf32>
    %46 = math.absf %43 : vector<8x8xf32>
    %cst_34 = arith.constant 0.000000e+00 : f32
    %47 = vector.broadcast %cst_34 : f32 to vector<8x8xf32>
    %48 = arith.subf %47, %46 : vector<8x8xf32>
    %49 = math.exp %48 : vector<8x8xf32>
    %cst_35 = arith.constant 1.000000e+00 : f32
    %50 = vector.broadcast %cst_35 : f32 to vector<8x8xf32>
    %51 = arith.addf %50, %49 : vector<8x8xf32>
    %52 = math.log %51 : vector<8x8xf32>
    %53 = arith.addf %45, %52 : vector<8x8xf32>
    %54 = vector.broadcast %1 : vector<1x8xf32> to vector<8x8xf32>
    %55 = arith.subf %54, %53 : vector<8x8xf32>
    %56 = vector.broadcast %2 : vector<1x8xf32> to vector<8x8xf32>
    %57 = arith.subf %55, %56 : vector<8x8xf32>
    %cst_36 = arith.constant 0.000000e+00 : f32
    %58 = vector.broadcast %cst_36 : f32 to vector<8x8xf32>
    %59 = arith.maximumf %57, %58 : vector<8x8xf32>
    %60 = math.absf %57 : vector<8x8xf32>
    %cst_37 = arith.constant 0.000000e+00 : f32
    %61 = vector.broadcast %cst_37 : f32 to vector<8x8xf32>
    %62 = arith.subf %61, %60 : vector<8x8xf32>
    %63 = math.exp %62 : vector<8x8xf32>
    %cst_38 = arith.constant 1.000000e+00 : f32
    %64 = vector.broadcast %cst_38 : f32 to vector<8x8xf32>
    %65 = arith.addf %64, %63 : vector<8x8xf32>
    %66 = math.log %65 : vector<8x8xf32>
    %67 = arith.addf %59, %66 : vector<8x8xf32>
    %68 = vector.broadcast %2 : vector<1x8xf32> to vector<8x8xf32>
    %69 = arith.addf %68, %67 : vector<8x8xf32>
    %70 = arith.select %5, %69, %41 : vector<8x8xi1>, vector<8x8xf32>
    %c0_39 = arith.constant 0 : index
    %c0_40 = arith.constant 0 : index
    %71 = vector.load %arg12[%c0_39, %c0_40] : memref<8x24xf32, #tpu.memory_space<vmem>>, vector<8x8xf32>
    tpu.vector_store %arg12[%c0_39, %c0_40], %70 {strides = array<i32>} : memref<8x24xf32, #tpu.memory_space<vmem>>, vector<8x8xf32>,
    %72 = vector.extract_strided_slice %13 {offsets = [0, 128], sizes = [8, 128], strides = [1, 1]} : vector<8x384xbf16> to vector<8x128xbf16>
    %c1 = arith.constant 1 : index
    %c0_41 = arith.constant 0 : index
    %c0_42 = arith.constant 0 : index
    %73 = vector.load %arg4[%c1, %c0_41, %c0_42] : memref<3x128x128xbf16, #tpu.memory_space<vmem>>, vector<1x128x128xbf16>
    %74 = vector.shape_cast %73 : vector<1x128x128xbf16> to vector<128x128xbf16>
    %cst_43 = arith.constant dense<0.000000e+00> : vector<8x128xf32>
    %75 = tpu.matmul %72, %74, %cst_43 {dimension_numbers = #tpu.dot_dimension_numbers<[1], [0], [0], [1], [0, 0, 1, 1], [], []>} : vector<8x128xbf16>, vector<128x128xbf16>, vector<8x128xf32> -> vector<8x128xf32>
    %c1_44 = arith.constant 1 : index
    %c0_45 = arith.constant 0 : index
    %c0_46 = arith.constant 0 : index
    %76 = vector.load %arg5[%c1_44, %c0_45, %c0_46] : memref<3x1x128xf32, #tpu.memory_space<vmem>>, vector<1x1x128xf32>
    %77 = vector.shape_cast %76 : vector<1x1x128xf32> to vector<1x128xf32>
    %78 = vector.broadcast %77 : vector<1x128xf32> to vector<8x128xf32>
    %79 = arith.addf %75, %78 : vector<8x128xf32>
    %cst_47 = arith.constant 0.000000e+00 : f32
    %80 = vector.broadcast %cst_47 : f32 to vector<8x128xf32>
    %81 = arith.maximumf %79, %80 : vector<8x128xf32>
    %82 = arith.truncf %81 : vector<8x128xf32> to vector<8x128xbf16>
    %c1_48 = arith.constant 1 : index
    %c0_49 = arith.constant 0 : index
    %c0_50 = arith.constant 0 : index
    %83 = vector.load %arg6[%c1_48, %c0_49, %c0_50] : memref<3x128x128xbf16, #tpu.memory_space<vmem>>, vector<1x128x128xbf16>
    %84 = vector.shape_cast %83 : vector<1x128x128xbf16> to vector<128x128xbf16>
    %cst_51 = arith.constant dense<0.000000e+00> : vector<8x128xf32>
    %85 = tpu.matmul %82, %84, %cst_51 {dimension_numbers = #tpu.dot_dimension_numbers<[1], [0], [0], [1], [0, 0, 1, 1], [], []>} : vector<8x128xbf16>, vector<128x128xbf16>, vector<8x128xf32> -> vector<8x128xf32>
    %c1_52 = arith.constant 1 : index
    %c0_53 = arith.constant 0 : index
    %c0_54 = arith.constant 0 : index
    %86 = vector.load %arg7[%c1_52, %c0_53, %c0_54] : memref<3x1x128xf32, #tpu.memory_space<vmem>>, vector<1x1x128xf32>
    %87 = vector.shape_cast %86 : vector<1x1x128xf32> to vector<1x128xf32>
    %88 = vector.broadcast %87 : vector<1x128xf32> to vector<8x128xf32>
    %89 = arith.addf %85, %88 : vector<8x128xf32>
    %cst_55 = arith.constant 0.000000e+00 : f32
    %90 = vector.broadcast %cst_55 : f32 to vector<8x128xf32>
    %91 = arith.maximumf %89, %90 : vector<8x128xf32>
    %92 = arith.truncf %91 : vector<8x128xf32> to vector<8x128xbf16>
    %c1_56 = arith.constant 1 : index
    %c0_57 = arith.constant 0 : index
    %c0_58 = arith.constant 0 : index
    %93 = vector.load %arg8[%c1_56, %c0_57, %c0_58] : memref<3x128x8xbf16, #tpu.memory_space<vmem>>, vector<1x128x8xbf16>
    %94 = vector.shape_cast %93 : vector<1x128x8xbf16> to vector<128x8xbf16>
    %cst_59 = arith.constant dense<0.000000e+00> : vector<8x8xf32>
    %95 = tpu.matmul %92, %94, %cst_59 {dimension_numbers = #tpu.dot_dimension_numbers<[1], [0], [0], [1], [0, 0, 1, 1], [], []>} : vector<8x128xbf16>, vector<128x8xbf16>, vector<8x8xf32> -> vector<8x8xf32>
    %c1_60 = arith.constant 1 : index
    %c0_61 = arith.constant 0 : index
    %c0_62 = arith.constant 0 : index
    %96 = vector.load %arg9[%c1_60, %c0_61, %c0_62] : memref<3x1x8xf32, #tpu.memory_space<vmem>>, vector<1x1x8xf32>
    %97 = vector.shape_cast %96 : vector<1x1x8xf32> to vector<1x8xf32>
    %98 = vector.broadcast %97 : vector<1x8xf32> to vector<8x8xf32>
    %99 = arith.addf %95, %98 : vector<8x8xf32>
    %100 = vector.broadcast %1 : vector<1x8xf32> to vector<8x8xf32>
    %101 = arith.subf %100, %99 : vector<8x8xf32>
    %cst_63 = arith.constant 0.000000e+00 : f32
    %102 = vector.broadcast %cst_63 : f32 to vector<8x8xf32>
    %103 = arith.maximumf %101, %102 : vector<8x8xf32>
    %104 = math.absf %101 : vector<8x8xf32>
    %cst_64 = arith.constant 0.000000e+00 : f32
    %105 = vector.broadcast %cst_64 : f32 to vector<8x8xf32>
    %106 = arith.subf %105, %104 : vector<8x8xf32>
    %107 = math.exp %106 : vector<8x8xf32>
    %cst_65 = arith.constant 1.000000e+00 : f32
    %108 = vector.broadcast %cst_65 : f32 to vector<8x8xf32>
    %109 = arith.addf %108, %107 : vector<8x8xf32>
    %110 = math.log %109 : vector<8x8xf32>
    %111 = arith.addf %103, %110 : vector<8x8xf32>
    %112 = vector.broadcast %1 : vector<1x8xf32> to vector<8x8xf32>
    %113 = arith.subf %112, %111 : vector<8x8xf32>
    %114 = vector.broadcast %2 : vector<1x8xf32> to vector<8x8xf32>
    %115 = arith.subf %113, %114 : vector<8x8xf32>
    %cst_66 = arith.constant 0.000000e+00 : f32
    %116 = vector.broadcast %cst_66 : f32 to vector<8x8xf32>
    %117 = arith.maximumf %115, %116 : vector<8x8xf32>
    %118 = math.absf %115 : vector<8x8xf32>
    %cst_67 = arith.constant 0.000000e+00 : f32
    %119 = vector.broadcast %cst_67 : f32 to vector<8x8xf32>
    %120 = arith.subf %119, %118 : vector<8x8xf32>
    %121 = math.exp %120 : vector<8x8xf32>
    %cst_68 = arith.constant 1.000000e+00 : f32
    %122 = vector.broadcast %cst_68 : f32 to vector<8x8xf32>
    %123 = arith.addf %122, %121 : vector<8x8xf32>
    %124 = math.log %123 : vector<8x8xf32>
    %125 = arith.addf %117, %124 : vector<8x8xf32>
    %126 = vector.broadcast %2 : vector<1x8xf32> to vector<8x8xf32>
    %127 = arith.addf %126, %125 : vector<8x8xf32>
    %128 = arith.select %5, %127, %99 : vector<8x8xi1>, vector<8x8xf32>
    %c0_69 = arith.constant 0 : index
    %c8 = arith.constant 8 : index
    %129 = vector.load %arg12[%c0_69, %c8] : memref<8x24xf32, #tpu.memory_space<vmem>>, vector<8x8xf32>
    tpu.vector_store %arg12[%c0_69, %c8], %128 {strides = array<i32>} : memref<8x24xf32, #tpu.memory_space<vmem>>, vector<8x8xf32>,
    %130 = vector.extract_strided_slice %13 {offsets = [0, 256], sizes = [8, 128], strides = [1, 1]} : vector<8x384xbf16> to vector<8x128xbf16>
    %c2 = arith.constant 2 : index
    %c0_70 = arith.constant 0 : index
    %c0_71 = arith.constant 0 : index
    %131 = vector.load %arg4[%c2, %c0_70, %c0_71] : memref<3x128x128xbf16, #tpu.memory_space<vmem>>, vector<1x128x128xbf16>
    %132 = vector.shape_cast %131 : vector<1x128x128xbf16> to vector<128x128xbf16>
    %cst_72 = arith.constant dense<0.000000e+00> : vector<8x128xf32>
    %133 = tpu.matmul %130, %132, %cst_72 {dimension_numbers = #tpu.dot_dimension_numbers<[1], [0], [0], [1], [0, 0, 1, 1], [], []>} : vector<8x128xbf16>, vector<128x128xbf16>, vector<8x128xf32> -> vector<8x128xf32>
    %c2_73 = arith.constant 2 : index
    %c0_74 = arith.constant 0 : index
    %c0_75 = arith.constant 0 : index
    %134 = vector.load %arg5[%c2_73, %c0_74, %c0_75] : memref<3x1x128xf32, #tpu.memory_space<vmem>>, vector<1x1x128xf32>
    %135 = vector.shape_cast %134 : vector<1x1x128xf32> to vector<1x128xf32>
    %136 = vector.broadcast %135 : vector<1x128xf32> to vector<8x128xf32>
    %137 = arith.addf %133, %136 : vector<8x128xf32>
    %cst_76 = arith.constant 0.000000e+00 : f32
    %138 = vector.broadcast %cst_76 : f32 to vector<8x128xf32>
    %139 = arith.maximumf %137, %138 : vector<8x128xf32>
    %140 = arith.truncf %139 : vector<8x128xf32> to vector<8x128xbf16>
    %c2_77 = arith.constant 2 : index
    %c0_78 = arith.constant 0 : index
    %c0_79 = arith.constant 0 : index
    %141 = vector.load %arg6[%c2_77, %c0_78, %c0_79] : memref<3x128x128xbf16, #tpu.memory_space<vmem>>, vector<1x128x128xbf16>
    %142 = vector.shape_cast %141 : vector<1x128x128xbf16> to vector<128x128xbf16>
    %cst_80 = arith.constant dense<0.000000e+00> : vector<8x128xf32>
    %143 = tpu.matmul %140, %142, %cst_80 {dimension_numbers = #tpu.dot_dimension_numbers<[1], [0], [0], [1], [0, 0, 1, 1], [], []>} : vector<8x128xbf16>, vector<128x128xbf16>, vector<8x128xf32> -> vector<8x128xf32>
    %c2_81 = arith.constant 2 : index
    %c0_82 = arith.constant 0 : index
    %c0_83 = arith.constant 0 : index
    %144 = vector.load %arg7[%c2_81, %c0_82, %c0_83] : memref<3x1x128xf32, #tpu.memory_space<vmem>>, vector<1x1x128xf32>
    %145 = vector.shape_cast %144 : vector<1x1x128xf32> to vector<1x128xf32>
    %146 = vector.broadcast %145 : vector<1x128xf32> to vector<8x128xf32>
    %147 = arith.addf %143, %146 : vector<8x128xf32>
    %cst_84 = arith.constant 0.000000e+00 : f32
    %148 = vector.broadcast %cst_84 : f32 to vector<8x128xf32>
    %149 = arith.maximumf %147, %148 : vector<8x128xf32>
    %150 = arith.truncf %149 : vector<8x128xf32> to vector<8x128xbf16>
    %c2_85 = arith.constant 2 : index
    %c0_86 = arith.constant 0 : index
    %c0_87 = arith.constant 0 : index
    %151 = vector.load %arg8[%c2_85, %c0_86, %c0_87] : memref<3x128x8xbf16, #tpu.memory_space<vmem>>, vector<1x128x8xbf16>
    %152 = vector.shape_cast %151 : vector<1x128x8xbf16> to vector<128x8xbf16>
    %cst_88 = arith.constant dense<0.000000e+00> : vector<8x8xf32>
    %153 = tpu.matmul %150, %152, %cst_88 {dimension_numbers = #tpu.dot_dimension_numbers<[1], [0], [0], [1], [0, 0, 1, 1], [], []>} : vector<8x128xbf16>, vector<128x8xbf16>, vector<8x8xf32> -> vector<8x8xf32>
    %c2_89 = arith.constant 2 : index
    %c0_90 = arith.constant 0 : index
    %c0_91 = arith.constant 0 : index
    %154 = vector.load %arg9[%c2_89, %c0_90, %c0_91] : memref<3x1x8xf32, #tpu.memory_space<vmem>>, vector<1x1x8xf32>
    %155 = vector.shape_cast %154 : vector<1x1x8xf32> to vector<1x8xf32>
    %156 = vector.broadcast %155 : vector<1x8xf32> to vector<8x8xf32>
    %157 = arith.addf %153, %156 : vector<8x8xf32>
    %158 = vector.broadcast %1 : vector<1x8xf32> to vector<8x8xf32>
    %159 = arith.subf %158, %157 : vector<8x8xf32>
    %cst_92 = arith.constant 0.000000e+00 : f32
    %160 = vector.broadcast %cst_92 : f32 to vector<8x8xf32>
    %161 = arith.maximumf %159, %160 : vector<8x8xf32>
    %162 = math.absf %159 : vector<8x8xf32>
    %cst_93 = arith.constant 0.000000e+00 : f32
    %163 = vector.broadcast %cst_93 : f32 to vector<8x8xf32>
    %164 = arith.subf %163, %162 : vector<8x8xf32>
    %165 = math.exp %164 : vector<8x8xf32>
    %cst_94 = arith.constant 1.000000e+00 : f32
    %166 = vector.broadcast %cst_94 : f32 to vector<8x8xf32>
    %167 = arith.addf %166, %165 : vector<8x8xf32>
    %168 = math.log %167 : vector<8x8xf32>
    %169 = arith.addf %161, %168 : vector<8x8xf32>
    %170 = vector.broadcast %1 : vector<1x8xf32> to vector<8x8xf32>
    %171 = arith.subf %170, %169 : vector<8x8xf32>
    %172 = vector.broadcast %2 : vector<1x8xf32> to vector<8x8xf32>
    %173 = arith.subf %171, %172 : vector<8x8xf32>
    %cst_95 = arith.constant 0.000000e+00 : f32
    %174 = vector.broadcast %cst_95 : f32 to vector<8x8xf32>
    %175 = arith.maximumf %173, %174 : vector<8x8xf32>
    %176 = math.absf %173 : vector<8x8xf32>
    %cst_96 = arith.constant 0.000000e+00 : f32
    %177 = vector.broadcast %cst_96 : f32 to vector<8x8xf32>
    %178 = arith.subf %177, %176 : vector<8x8xf32>
    %179 = math.exp %178 : vector<8x8xf32>
    %cst_97 = arith.constant 1.000000e+00 : f32
    %180 = vector.broadcast %cst_97 : f32 to vector<8x8xf32>
    %181 = arith.addf %180, %179 : vector<8x8xf32>
    %182 = math.log %181 : vector<8x8xf32>
    %183 = arith.addf %175, %182 : vector<8x8xf32>
    %184 = vector.broadcast %2 : vector<1x8xf32> to vector<8x8xf32>
    %185 = arith.addf %184, %183 : vector<8x8xf32>
    %186 = arith.select %5, %185, %157 : vector<8x8xi1>, vector<8x8xf32>
    %c0_98 = arith.constant 0 : index
    %c16 = arith.constant 16 : index
    %187 = vector.load %arg12[%c0_98, %c16] : memref<8x24xf32, #tpu.memory_space<vmem>>, vector<8x8xf32>
    tpu.vector_store %arg12[%c0_98, %c16], %186 {strides = array<i32>} : memref<8x24xf32, #tpu.memory_space<vmem>>, vector<8x8xf32>,
    return
  }
  func.func @transform_0(%arg0: i32) -> (i32, i32) {
    %c0_i32 = arith.constant 0 : i32
    %c0_i32_0 = arith.constant 0 : i32
    return %arg0, %c0_i32 : i32, i32
  }
  func.func @transform_1(%arg0: i32) -> (i32, i32) {
    %c0_i32 = arith.constant 0 : i32
    %c0_i32_0 = arith.constant 0 : i32
    %c0_i32_1 = arith.constant 0 : i32
    return %c0_i32, %c0_i32_0 : i32, i32
  }
  func.func @transform_2(%arg0: i32) -> (i32, i32) {
    %c0_i32 = arith.constant 0 : i32
    %c0_i32_0 = arith.constant 0 : i32
    %c0_i32_1 = arith.constant 0 : i32
    return %c0_i32, %c0_i32_0 : i32, i32
  }
  func.func @transform_3(%arg0: i32) -> (i32, i32, i32) {
    %c0_i32 = arith.constant 0 : i32
    %c0_i32_0 = arith.constant 0 : i32
    %c0_i32_1 = arith.constant 0 : i32
    %c0_i32_2 = arith.constant 0 : i32
    return %c0_i32, %c0_i32_0, %c0_i32_1 : i32, i32, i32
  }
  func.func @transform_4(%arg0: i32) -> (i32, i32, i32) {
    %c0_i32 = arith.constant 0 : i32
    %c0_i32_0 = arith.constant 0 : i32
    %c0_i32_1 = arith.constant 0 : i32
    %c0_i32_2 = arith.constant 0 : i32
    return %c0_i32, %c0_i32_0, %c0_i32_1 : i32, i32, i32
  }
  func.func @transform_5(%arg0: i32) -> (i32, i32, i32) {
    %c0_i32 = arith.constant 0 : i32
    %c0_i32_0 = arith.constant 0 : i32
    %c0_i32_1 = arith.constant 0 : i32
    %c0_i32_2 = arith.constant 0 : i32
    return %c0_i32, %c0_i32_0, %c0_i32_1 : i32, i32, i32
  }
  func.func @transform_6(%arg0: i32) -> (i32, i32, i32) {
    %c0_i32 = arith.constant 0 : i32
    %c0_i32_0 = arith.constant 0 : i32
    %c0_i32_1 = arith.constant 0 : i32
    %c0_i32_2 = arith.constant 0 : i32
    return %c0_i32, %c0_i32_0, %c0_i32_1 : i32, i32, i32
  }
  func.func @transform_7(%arg0: i32) -> (i32, i32, i32) {
    %c0_i32 = arith.constant 0 : i32
    %c0_i32_0 = arith.constant 0 : i32
    %c0_i32_1 = arith.constant 0 : i32
    %c0_i32_2 = arith.constant 0 : i32
    return %c0_i32, %c0_i32_0, %c0_i32_1 : i32, i32, i32
  }
  func.func @transform_8(%arg0: i32) -> (i32, i32, i32) {
    %c0_i32 = arith.constant 0 : i32
    %c0_i32_0 = arith.constant 0 : i32
    %c0_i32_1 = arith.constant 0 : i32
    %c0_i32_2 = arith.constant 0 : i32
    return %c0_i32, %c0_i32_0, %c0_i32_1 : i32, i32, i32
  }
  func.func @transform_9(%arg0: i32) -> (i32, i32) {
    %c0_i32 = arith.constant 0 : i32
    %c0_i32_0 = arith.constant 0 : i32
    %c0_i32_1 = arith.constant 0 : i32
    return %c0_i32, %c0_i32_0 : i32, i32
  }
  func.func @transform_10(%arg0: i32) -> (i32, i32) {
    %c0_i32 = arith.constant 0 : i32
    %c0_i32_0 = arith.constant 0 : i32
    %c0_i32_1 = arith.constant 0 : i32
    return %c0_i32, %c0_i32_0 : i32, i32
  }
  func.func @transform_11(%arg0: i32) -> (i32, i32) {
    %c0_i32 = arith.constant 0 : i32
    %c0_i32_0 = arith.constant 0 : i32
    return %arg0, %c0_i32 : i32, i32
  }
}

</mosaic_0001>

<llo_original>
// kernel: tpu_custom_call.1
$region0: #{tpu_custom_call.1}
  #allocation0 [shape = 'u32[]', space=smem, size = 0x4, offset = 0x4, fixed_abs, tag = 'smem constant byte address 0x4 - core index']
  #allocation1 [shape = 'u32[144,128]{1,0:T(1,128)}', space=vmem, size = 0x12000, scoped, tag = 'internal scratch']
  %s0 = inlined_call_operand.hbm [shape: bf16[8,6], index: 0, kind: input, shape index: {}]
  %s1 = inlined_call_operand.vmem [shape: bf16[6,384], index: 1, kind: input, shape index: {}]
  %s2 = inlined_call_operand.hbm [shape: f32[1,384], index: 2, kind: input, shape index: {}]
  %s3 = inlined_call_operand.vmem [shape: bf16[3,128,128], index: 3, kind: input, shape index: {}]
  %s4 = inlined_call_operand.hbm [shape: f32[3,1,128], index: 4, kind: input, shape index: {}]
  %s5 = inlined_call_operand.hbm [shape: bf16[3,128,128], index: 5, kind: input, shape index: {}]
  %s6 = inlined_call_operand.hbm [shape: f32[3,1,128], index: 6, kind: input, shape index: {}]
  %s7 = inlined_call_operand.vmem [shape: bf16[3,128,8], index: 7, kind: input, shape index: {}]
  %s8 = inlined_call_operand.hbm [shape: f32[3,1,8], index: 8, kind: input, shape index: {}]
  %s9 = inlined_call_operand.vmem [shape: f32[1,8], index: 9, kind: input, shape index: {}]
  %s10 = inlined_call_operand.vmem [shape: f32[1,8], index: 10, kind: input, shape index: {}]
  %s11 = inlined_call_operand.hbm [shape: f32[8,24], index: 11, kind: output, shape index: {}]
  %s12 = sld [smem:[#allocation0]]
  $region78: #{tpu_custom_call.1} parent=0
    _
  %s14 = ssub.s32 1, %s12
  %s15 = scalar_select 0, %s14, %s12
  $region1: #{tpu_custom_call.1} parent=0
    #allocation2 [shape = 'u8[2048]{0}', space=vmem, size = 0x800, scoped, tag = 'input window, operand 0, single buffered']
    #allocation3 [shape = 's32[1]{0}', space=sflag, size = 0x4, scoped, tag = 'scoped memory for tpu_custom_call.1']
    #allocation4 [shape = 's32[1]{0}', space=sflag, size = 0x4, scoped, tag = 'scoped memory for tpu_custom_call.1']
    #allocation5 [shape = 'u8[1536]{0}', space=vmem, size = 0x800, scoped, tag = 'input window, operand 2, single buffered']
    #allocation6 [shape = 's32[1]{0}', space=sflag, size = 0x4, scoped, tag = 'scoped memory for tpu_custom_call.1']
    #allocation7 [shape = 'u8[1536]{0}', space=vmem, size = 0x800, scoped, tag = 'input window, operand 4, single buffered']
    #allocation8 [shape = 'u8[98304]{0}', space=vmem, size = 0x18000, scoped, tag = 'input window, operand 5, single buffered']
    #allocation9 [shape = 's32[1]{0}', space=sflag, size = 0x4, scoped, tag = 'scoped memory for tpu_custom_call.1']
    #allocation10 [shape = 'u8[1536]{0}', space=vmem, size = 0x800, scoped, tag = 'input window, operand 6, single buffered']
    #allocation11 [shape = 'u8[1536]{0}', space=vmem, size = 0x800, scoped, tag = 'input window, operand 8, single buffered']
    #allocation12 [shape = 's32[1]{0}', space=sflag, size = 0x4, scoped, tag = 'scoped memory for tpu_custom_call.1']
    #allocation13 [shape = 'u8[4096]{0}', space=vmem, size = 0x1000, scoped, tag = 'output window, operand 0, single buffered']
    %16 = vsyncpa [#allocation3], 0
    %17 = vsyncpa [#allocation6], 0
    %18 = vsyncpa [#allocation9], 0
    %19 = vsyncpa [#allocation12], 0
    %20 = vsyncpa [#allocation4], 0
    // Predicated region
    $region2: #{tpu_custom_call.1} parent=1 // pred_check
      _
    $region3: #{tpu_custom_call.1} parent=1 // pred_check_branch
      %22 = sbr.rel (0) target = $region5
    $region4: #{tpu_custom_call.1} parent=1 // pred_region
      %s24 = ssub.s32 64, 64
      %25 = vsyncadd [#allocation3], %s24
      %s27 = sshll.u32 [#allocation2], 4
      %s28 = int_to_ptr.vmem [resolvable:$true] %s27
      %30 = dma.hbm_to_vmem [thread:$0]  %s0, 64, %s28, [#allocation3]
    $region5: #{tpu_custom_call.1} parent=1 // pred_fallthru
      _
    // Predicated region
    $region6: #{tpu_custom_call.1} parent=1 // pred_check
      _
    $region7: #{tpu_custom_call.1} parent=1 // pred_check_branch
      %32 = sbr.rel (0) target = $region9
    $region8: #{tpu_custom_call.1} parent=1 // pred_region
      _
    $region9: #{tpu_custom_call.1} parent=1 // pred_fallthru
      _
    // Predicated region
    $region10: #{tpu_custom_call.1} parent=1 // pred_check
      _
    $region11: #{tpu_custom_call.1} parent=1 // pred_check_branch
      %34 = sbr.rel (0) target = $region13
    $region12: #{tpu_custom_call.1} parent=1 // pred_region
      %s36 = ssub.s32 48, 48
      %37 = vsyncadd [#allocation6], %s36
      %s39 = sshll.u32 [#allocation5], 4
      %s40 = int_to_ptr.vmem [resolvable:$true] %s39
      %42 = dma.hbm_to_vmem [thread:$0]  %s2, 48, %s40, [#allocation6]
    $region13: #{tpu_custom_call.1} parent=1 // pred_fallthru
      _
    // Predicated region
    $region14: #{tpu_custom_call.1} parent=1 // pred_check
      _
    $region15: #{tpu_custom_call.1} parent=1 // pred_check_branch
      %44 = sbr.rel (0) target = $region17
    $region16: #{tpu_custom_call.1} parent=1 // pred_region
      _
    $region17: #{tpu_custom_call.1} parent=1 // pred_fallthru
      _
    // Predicated region
    $region18: #{tpu_custom_call.1} parent=1 // pred_check
      _
    $region19: #{tpu_custom_call.1} parent=1 // pred_check_branch
      %46 = sbr.rel (0) target = $region21
    $region20: #{tpu_custom_call.1} parent=1 // pred_region
      %s48 = ssub.s32 48, 48
      %49 = vsyncadd [#allocation6], %s48
      %s50 = sshll.u32 [#allocation7], 4
      %s51 = int_to_ptr.vmem [resolvable:$true] %s50
      %56 = dma.hbm_to_vmem [thread:$0]  %s4, 48, %s51, [#allocation6], 16, 16, 1
    $region21: #{tpu_custom_call.1} parent=1 // pred_fallthru
      _
    // Predicated region
    $region22: #{tpu_custom_call.1} parent=1 // pred_check
      _
    $region23: #{tpu_custom_call.1} parent=1 // pred_check_branch
      %58 = sbr.rel (0) target = $region25
    $region24: #{tpu_custom_call.1} parent=1 // pred_region
      %s60 = ssub.s32 3072, 3072
      %61 = vsyncadd [#allocation9], %s60
      %s62 = sshll.u32 [#allocation8], 4
      %s63 = int_to_ptr.vmem [resolvable:$true] %s62
      %68 = dma.hbm_to_vmem [thread:$0]  %s5, 3072, %s63, [#allocation9], 64, 64, 4
    $region25: #{tpu_custom_call.1} parent=1 // pred_fallthru
      _
    // Predicated region
    $region26: #{tpu_custom_call.1} parent=1 // pred_check
      _
    $region27: #{tpu_custom_call.1} parent=1 // pred_check_branch
      %70 = sbr.rel (0) target = $region29
    $region28: #{tpu_custom_call.1} parent=1 // pred_region
      %s72 = ssub.s32 48, 48
      %73 = vsyncadd [#allocation9], %s72
      %s74 = sshll.u32 [#allocation10], 4
      %s75 = int_to_ptr.vmem [resolvable:$true] %s74
      %80 = dma.hbm_to_vmem [thread:$0]  %s6, 48, %s75, [#allocation9], 16, 16, 1
    $region29: #{tpu_custom_call.1} parent=1 // pred_fallthru
      _
    // Predicated region
    $region30: #{tpu_custom_call.1} parent=1 // pred_check
      _
    $region31: #{tpu_custom_call.1} parent=1 // pred_check_branch
      %82 = sbr.rel (0) target = $region33
    $region32: #{tpu_custom_call.1} parent=1 // pred_region
      _
    $region33: #{tpu_custom_call.1} parent=1 // pred_fallthru
      _
    // Predicated region
    $region34: #{tpu_custom_call.1} parent=1 // pred_check
      _
    $region35: #{tpu_custom_call.1} parent=1 // pred_check_branch
      %84 = sbr.rel (0) target = $region37
    $region36: #{tpu_custom_call.1} parent=1 // pred_region
      %s86 = ssub.s32 48, 48
      %87 = vsyncadd [#allocation12], %s86
      %s88 = sshll.u32 [#allocation11], 4
      %s89 = int_to_ptr.vmem [resolvable:$true] %s88
      %94 = dma.hbm_to_vmem [thread:$0]  %s8, 48, %s89, [#allocation12], 16, 16, 1
    $region37: #{tpu_custom_call.1} parent=1 // pred_fallthru
      _
    // Predicated region
    $region38: #{tpu_custom_call.1} parent=1 // pred_check
      _
    $region39: #{tpu_custom_call.1} parent=1 // pred_check_branch
      %96 = sbr.rel (0) target = $region41
    $region40: #{tpu_custom_call.1} parent=1 // pred_region
      _
    $region41: #{tpu_custom_call.1} parent=1 // pred_fallthru
      _
    // Predicated region
    $region42: #{tpu_custom_call.1} parent=1 // pred_check
      _
    $region43: #{tpu_custom_call.1} parent=1 // pred_check_branch
      %98 = sbr.rel (0) target = $region45
    $region44: #{tpu_custom_call.1} parent=1 // pred_region
      _
    $region45: #{tpu_custom_call.1} parent=1 // pred_fallthru
      _
    // Predicated region
    $region46: #{tpu_custom_call.1} parent=1 // pred_check
      _
    $region47: #{tpu_custom_call.1} parent=1 // pred_check_branch
      %100 = sbr.rel (0) target = $region49
    $region48: #{tpu_custom_call.1} parent=1 // pred_region
      %101 = dma.done [#allocation3], 64
    $region49: #{tpu_custom_call.1} parent=1 // pred_fallthru
      _
    // Predicated region
    $region50: #{tpu_custom_call.1} parent=1 // pred_check
      _
    $region51: #{tpu_custom_call.1} parent=1 // pred_check_branch
      %103 = sbr.rel (0) target = $region53
    $region52: #{tpu_custom_call.1} parent=1 // pred_region
      %104 = dma.done [#allocation6], 48
    $region53: #{tpu_custom_call.1} parent=1 // pred_fallthru
      _
    // Predicated region
    $region54: #{tpu_custom_call.1} parent=1 // pred_check
      _
    $region55: #{tpu_custom_call.1} parent=1 // pred_check_branch
      %106 = sbr.rel (0) target = $region57
    $region56: #{tpu_custom_call.1} parent=1 // pred_region
      %107 = dma.done [#allocation6], 48
    $region57: #{tpu_custom_call.1} parent=1 // pred_fallthru
      _
    // Predicated region
    $region58: #{tpu_custom_call.1} parent=1 // pred_check
      _
    $region59: #{tpu_custom_call.1} parent=1 // pred_check_branch
      %109 = sbr.rel (0) target = $region61
    $region60: #{tpu_custom_call.1} parent=1 // pred_region
      %110 = dma.done [#allocation9], 3072
    $region61: #{tpu_custom_call.1} parent=1 // pred_fallthru
      _
    // Predicated region
    $region62: #{tpu_custom_call.1} parent=1 // pred_check
      _
    $region63: #{tpu_custom_call.1} parent=1 // pred_check_branch
      %112 = sbr.rel (0) target = $region65
    $region64: #{tpu_custom_call.1} parent=1 // pred_region
      %113 = dma.done [#allocation9], 48
    $region65: #{tpu_custom_call.1} parent=1 // pred_fallthru
      _
    // Predicated region
    $region66: #{tpu_custom_call.1} parent=1 // pred_check
      _
    $region67: #{tpu_custom_call.1} parent=1 // pred_check_branch
      %115 = sbr.rel (0) target = $region69
    $region68: #{tpu_custom_call.1} parent=1 // pred_region
      %116 = dma.done [#allocation12], 48
    $region69: #{tpu_custom_call.1} parent=1 // pred_fallthru
      _
    %v118 = vld [vmem:[#allocation2] sm:$0xf]
    %v119 = vld [vmem:[%s9] sm:$0x1]
    %v120 = vld [vmem:[%s10] sm:$0x1]
    %v121 = vlaneseq
    %v122 = vand.u32 %v121, 127
    %vm123 = vcmp.ge.s32.totalorder %v122, 4
    %v124 = vld [vmem:[%s1] sm:$0x77]
    %v125 = vld [vmem:[%s1 + $0x8] sm:$0x7]
    %v126 = vld [vmem:[#allocation5] sm:$0x7]
    %v128 = vlaneseq
    %v129 = vshrl.u32 %v128, 7
    %v130 = vsub.s32 0, %v129
    %v131 = vrot.slane %v126, %v130
    %v132 = vlaneseq
    %v133 = vshrl.u32 %v132, 7
    %v134 = vsub.s32 1, %v133
    %v135 = vrot.slane %v126, %v134
    %v136 = vlaneseq
    %v137 = vshrl.u32 %v136, 7
    %v138 = vsub.s32 2, %v137
    %v139 = vrot.slane %v126, %v138
    %v145 = vunpack.c.l.b16 %v124
    %v146 = vunpack.c.h.b16 %v124
    %v147 = vunpack.c.l.b16 %v125
    %v148 = vpack.c.b16 %v145, %v145
    %v149 = vpack.c.b16 %v146, %v146
    %v150 = vpack.c.b16 %v147, %v147
    %vm151 = vcmask 48128
    %v153 = vsel %vm151, %v118, 0
    %vm155 = vcmask 1042432
    %v157 = vsel %vm155, %v148, 0
    %v160 = vsel %vm155, %v149, 0
    %v163 = vsel %vm155, %v150, 0
    %165 = vmatprep.subr.bf16.mxu0 0
    %166 = vmatpush1.bf16.msra.mxu0 0
    %167 = vmatprep.subr.bf16.mxu0 0
    %168 = vmatpush1.bf16.msra.mxu0 0
    %169 = vmatprep.subr.bf16.mxu0 0
    %170 = vmatpush1.bf16.msra.mxu0 0
    %171 = vmatprep.subr.bf16.mxu0 0
    %172 = vmatpush1.bf16.msra.mxu0 0
    %173 = vmatprep.subr.bf16.mxu0 0
    %174 = vmatpush1.bf16.msra.mxu0 0
    %175 = vmatprep.subr.bf16.mxu0 0
    %176 = vmatpush1.bf16.msra.mxu0 0
    %177 = vmatprep.subr.bf16.mxu0 0
    %178 = vmatpush1.bf16.msra.mxu0 0
    %179 = vmatprep.subr.bf16.mxu0 %v160
    %180 = vmatpush1.bf16.msra.mxu0 %v157
    %181 = vmatprep.subr.bf16.mxu0 0
    %182 = vmatpush2.bf16.msra.mxu0 0
    %183 = vmatprep.subr.bf16.mxu0 0
    %184 = vmatpush2.bf16.msra.mxu0 0
    %185 = vmatprep.subr.bf16.mxu0 0
    %186 = vmatpush2.bf16.msra.mxu0 0
    %187 = vmatprep.subr.bf16.mxu0 0
    %188 = vmatpush2.bf16.msra.mxu0 0
    %189 = vmatprep.subr.bf16.mxu0 0
    %190 = vmatpush2.bf16.msra.mxu0 0
    %191 = vmatprep.subr.bf16.mxu0 0
    %192 = vmatpush2.bf16.msra.mxu0 0
    %193 = vmatprep.subr.bf16.mxu0 0
    %194 = vmatpush2.bf16.msra.mxu0 0
    %195 = vmatprep.subr.bf16.mxu0 0
    %196 = vmatpush2.bf16.msra.mxu0 0
    %197 = vmatprep.mubr.bf16.mxu0 0
    %198 = vmatmul.mubr.bf16.gmra.mxu0 %v153
    %v199 = vpop.f32.mrf.mxu0
    %v200 = vadd.f32 %v131, %v199
    %v201 = vpop.f32.mrf.mxu0
    %v202 = vadd.f32 %v135, %v201
    %v203 = vpop.f32.mrf.mxu0
    %v204 = vpop.f32.mrf.mxu0
    %205 = vdwg.mxu0
    %206 = vmatprep.subr.bf16.mxu0 0
    %207 = vmatpush1.bf16.msra.mxu0 0
    %208 = vmatprep.subr.bf16.mxu0 0
    %209 = vmatpush1.bf16.msra.mxu0 0
    %210 = vmatprep.subr.bf16.mxu0 0
    %211 = vmatpush1.bf16.msra.mxu0 0
    %212 = vmatprep.subr.bf16.mxu0 0
    %213 = vmatpush1.bf16.msra.mxu0 0
    %214 = vmatprep.subr.bf16.mxu0 0
    %215 = vmatpush1.bf16.msra.mxu0 0
    %216 = vmatprep.subr.bf16.mxu0 0
    %217 = vmatpush1.bf16.msra.mxu0 0
    %218 = vmatprep.subr.bf16.mxu0 0
    %219 = vmatpush1.bf16.msra.mxu0 0
    %220 = vmatprep.subr.bf16.mxu0 0
    %221 = vmatpush1.bf16.msra.mxu0 %v163
    %222 = vmatprep.subr.bf16.mxu0 0
    %223 = vmatpush2.bf16.msra.mxu0 0
    %224 = vmatprep.subr.bf16.mxu0 0
    %225 = vmatpush2.bf16.msra.mxu0 0
    %226 = vmatprep.subr.bf16.mxu0 0
    %227 = vmatpush2.bf16.msra.mxu0 0
    %228 = vmatprep.subr.bf16.mxu0 0
    %229 = vmatpush2.bf16.msra.mxu0 0
    %230 = vmatprep.subr.bf16.mxu0 0
    %231 = vmatpush2.bf16.msra.mxu0 0
    %232 = vmatprep.subr.bf16.mxu0 0
    %233 = vmatpush2.bf16.msra.mxu0 0
    %234 = vmatprep.subr.bf16.mxu0 0
    %235 = vmatpush2.bf16.msra.mxu0 0
    %236 = vmatprep.subr.bf16.mxu0 0
    %237 = vmatpush2.bf16.msra.mxu0 0
    %238 = vmatprep.mubr.bf16.mxu0 0
    %239 = vmatmul.mubr.bf16.gmra.mxu0 %v153
    %v240 = vpop.f32.mrf.mxu0
    %v241 = vadd.f32 %v139, %v240
    %v242 = vpop.f32.mrf.mxu0
    %v243 = vpop.f32.mrf.mxu0
    %v244 = vpop.f32.mrf.mxu0
    %245 = vdwg.mxu0
    %v246 = vmax.f32 %v200, 0.0
    %v247 = vmax.f32 %v202, 0.0
    %v248 = vmax.f32 %v241, 0.0
    %v249 = vpack.c.bf16 %v246, %v246
    %v250 = vpack.c.bf16 %v247, %v247
    %v251 = vpack.c.bf16 %v248, %v248
    %v252 = vld [vmem:[%s3] sm:$0xf]
    %v253 = vld [vmem:[%s3 + $0x4] sm:$0xf]
    %v254 = vld [vmem:[%s3 + $0x8] sm:$0xf]
    %v255 = vld [vmem:[%s3 + $0xc] sm:$0xf]
    %v256 = vld [vmem:[%s3 + $0x10] sm:$0xf]
    %v257 = vld [vmem:[%s3 + $0x14] sm:$0xf]
    %v258 = vld [vmem:[%s3 + $0x18] sm:$0xf]
    %v259 = vld [vmem:[%s3 + $0x1c] sm:$0xf]
    %v260 = vld [vmem:[%s3 + $0x20] sm:$0xf]
    %v261 = vld [vmem:[%s3 + $0x24] sm:$0xf]
    %v262 = vld [vmem:[%s3 + $0x28] sm:$0xf]
    %v263 = vld [vmem:[%s3 + $0x2c] sm:$0xf]
    %v264 = vld [vmem:[%s3 + $0x30] sm:$0xf]
    %v265 = vld [vmem:[%s3 + $0x34] sm:$0xf]
    %v266 = vld [vmem:[%s3 + $0x38] sm:$0xf]
    %v267 = vld [vmem:[%s3 + $0x3c] sm:$0xf]
    %v268 = vld [vmem:[#allocation7] sm:$0x1]
    %v270 = vlaneseq
    %v271 = vshrl.u32 %v270, 7
    %v272 = vsub.s32 0, %v271
    %v273 = vrot.slane %v268, %v272
    %v291 = vunpack.c.l.b16 %v252
    %v292 = vunpack.c.l.b16 %v253
    %v293 = vunpack.c.l.b16 %v254
    %v294 = vunpack.c.l.b16 %v255
    %v295 = vunpack.c.l.b16 %v256
    %v296 = vunpack.c.l.b16 %v257
    %v297 = vunpack.c.l.b16 %v258
    %v298 = vunpack.c.l.b16 %v259
    %v299 = vunpack.c.l.b16 %v260
    %v300 = vunpack.c.l.b16 %v261
    %v301 = vunpack.c.l.b16 %v262
    %v302 = vunpack.c.l.b16 %v263
    %v303 = vunpack.c.l.b16 %v264
    %v304 = vunpack.c.l.b16 %v265
    %v305 = vunpack.c.l.b16 %v266
    %v306 = vunpack.c.l.b16 %v267
    %v307 = vpack.c.b16 %v292, %v291
    %v308 = vpack.c.b16 %v294, %v293
    %v309 = vpack.c.b16 %v296, %v295
    %v310 = vpack.c.b16 %v298, %v297
    %v311 = vpack.c.b16 %v300, %v299
    %v312 = vpack.c.b16 %v302, %v301
    %v313 = vpack.c.b16 %v304, %v303
    %v314 = vpack.c.b16 %v306, %v305
    %323 = vmatprep.subr.bf16.mxu0 0
    %324 = vmatpush1.bf16.msra.mxu0 %v314
    %325 = vmatprep.subr.bf16.mxu0 0
    %326 = vmatpush1.bf16.msra.mxu0 %v313
    %327 = vmatprep.subr.bf16.mxu0 0
    %328 = vmatpush1.bf16.msra.mxu0 %v312
    %329 = vmatprep.subr.bf16.mxu0 0
    %330 = vmatpush1.bf16.msra.mxu0 %v311
    %331 = vmatprep.subr.bf16.mxu0 0
    %332 = vmatpush1.bf16.msra.mxu0 %v310
    %333 = vmatprep.subr.bf16.mxu0 0
    %334 = vmatpush1.bf16.msra.mxu0 %v309
    %335 = vmatprep.subr.bf16.mxu0 0
    %336 = vmatpush1.bf16.msra.mxu0 %v308
    %337 = vmatprep.subr.bf16.mxu0 0
    %338 = vmatpush1.bf16.msra.mxu0 %v307
    %339 = vmatprep.subr.bf16.mxu0 0
    %340 = vmatpush2.bf16.msra.mxu0 0
    %341 = vmatprep.subr.bf16.mxu0 0
    %342 = vmatpush2.bf16.msra.mxu0 0
    %343 = vmatprep.subr.bf16.mxu0 0
    %344 = vmatpush2.bf16.msra.mxu0 0
    %345 = vmatprep.subr.bf16.mxu0 0
    %346 = vmatpush2.bf16.msra.mxu0 0
    %347 = vmatprep.subr.bf16.mxu0 0
    %348 = vmatpush2.bf16.msra.mxu0 0
    %349 = vmatprep.subr.bf16.mxu0 0
    %350 = vmatpush2.bf16.msra.mxu0 0
    %351 = vmatprep.subr.bf16.mxu0 0
    %352 = vmatpush2.bf16.msra.mxu0 0
    %353 = vmatprep.subr.bf16.mxu0 0
    %354 = vmatpush2.bf16.msra.mxu0 0
    %355 = vmatprep.mubr.bf16.mxu0 0
    %356 = vmatmul.mubr.bf16.gmra.mxu0 %v249
    %v357 = vpop.f32.mrf.mxu0
    %v358 = vadd.f32 %v273, %v357
    %v359 = vpop.f32.mrf.mxu0
    %v360 = vpop.f32.mrf.mxu0
    %v361 = vpop.f32.mrf.mxu0
    %362 = vdwg.mxu0
    %v363 = vmax.f32 %v358, 0.0
    %v364 = vpack.c.bf16 %v363, %v363
    %v365 = vld [vmem:[#allocation8] sm:$0xf]
    %v366 = vld [vmem:[#allocation8 + $0x4] sm:$0xf]
    %v367 = vld [vmem:[#allocation8 + $0x8] sm:$0xf]
    %v368 = vld [vmem:[#allocation8 + $0xc] sm:$0xf]
    %v369 = vld [vmem:[#allocation8 + $0x10] sm:$0xf]
    %v370 = vld [vmem:[#allocation8 + $0x14] sm:$0xf]
    %v371 = vld [vmem:[#allocation8 + $0x18] sm:$0xf]
    %v372 = vld [vmem:[#allocation8 + $0x1c] sm:$0xf]
    %v373 = vld [vmem:[#allocation8 + $0x20] sm:$0xf]
    %v374 = vld [vmem:[#allocation8 + $0x24] sm:$0xf]
    %v375 = vld [vmem:[#allocation8 + $0x28] sm:$0xf]
    %v376 = vld [vmem:[#allocation8 + $0x2c] sm:$0xf]
    %v377 = vld [vmem:[#allocation8 + $0x30] sm:$0xf]
    %v378 = vld [vmem:[#allocation8 + $0x34] sm:$0xf]
    %v379 = vld [vmem:[#allocation8 + $0x38] sm:$0xf]
    %v380 = vld [vmem:[#allocation8 + $0x3c] sm:$0xf]
    %v381 = vld [vmem:[#allocation10] sm:$0x1]
    %v383 = vlaneseq
    %v384 = vshrl.u32 %v383, 7
    %v385 = vsub.s32 0, %v384
    %v386 = vrot.slane %v381, %v385
    %v404 = vunpack.c.l.b16 %v365
    %v405 = vunpack.c.l.b16 %v366
    %v406 = vunpack.c.l.b16 %v367
    %v407 = vunpack.c.l.b16 %v368
    %v408 = vunpack.c.l.b16 %v369
    %v409 = vunpack.c.l.b16 %v370
    %v410 = vunpack.c.l.b16 %v371
    %v411 = vunpack.c.l.b16 %v372
    %v412 = vunpack.c.l.b16 %v373
    %v413 = vunpack.c.l.b16 %v374
    %v414 = vunpack.c.l.b16 %v375
    %v415 = vunpack.c.l.b16 %v376
    %v416 = vunpack.c.l.b16 %v377
    %v417 = vunpack.c.l.b16 %v378
    %v418 = vunpack.c.l.b16 %v379
    %v419 = vunpack.c.l.b16 %v380
    %v420 = vpack.c.b16 %v405, %v404
    %v421 = vpack.c.b16 %v407, %v406
    %v422 = vpack.c.b16 %v409, %v408
    %v423 = vpack.c.b16 %v411, %v410
    %v424 = vpack.c.b16 %v413, %v412
    %v425 = vpack.c.b16 %v415, %v414
    %v426 = vpack.c.b16 %v417, %v416
    %v427 = vpack.c.b16 %v419, %v418
    %436 = vmatprep.subr.bf16.mxu0 0
    %437 = vmatpush1.bf16.msra.mxu0 %v427
    %438 = vmatprep.subr.bf16.mxu0 0
    %439 = vmatpush1.bf16.msra.mxu0 %v426
    %440 = vmatprep.subr.bf16.mxu0 0
    %441 = vmatpush1.bf16.msra.mxu0 %v425
    %442 = vmatprep.subr.bf16.mxu0 0
    %443 = vmatpush1.bf16.msra.mxu0 %v424
    %444 = vmatprep.subr.bf16.mxu0 0
    %445 = vmatpush1.bf16.msra.mxu0 %v423
    %446 = vmatprep.subr.bf16.mxu0 0
    %447 = vmatpush1.bf16.msra.mxu0 %v422
    %448 = vmatprep.subr.bf16.mxu0 0
    %449 = vmatpush1.bf16.msra.mxu0 %v421
    %450 = vmatprep.subr.bf16.mxu0 0
    %451 = vmatpush1.bf16.msra.mxu0 %v420
    %452 = vmatprep.subr.bf16.mxu0 0
    %453 = vmatpush2.bf16.msra.mxu0 0
    %454 = vmatprep.subr.bf16.mxu0 0
    %455 = vmatpush2.bf16.msra.mxu0 0
    %456 = vmatprep.subr.bf16.mxu0 0
    %457 = vmatpush2.bf16.msra.mxu0 0
    %458 = vmatprep.subr.bf16.mxu0 0
    %459 = vmatpush2.bf16.msra.mxu0 0
    %460 = vmatprep.subr.bf16.mxu0 0
    %461 = vmatpush2.bf16.msra.mxu0 0
    %462 = vmatprep.subr.bf16.mxu0 0
    %463 = vmatpush2.bf16.msra.mxu0 0
    %464 = vmatprep.subr.bf16.mxu0 0
    %465 = vmatpush2.bf16.msra.mxu0 0
    %466 = vmatprep.subr.bf16.mxu0 0
    %467 = vmatpush2.bf16.msra.mxu0 0
    %468 = vmatprep.mubr.bf16.mxu0 0
    %469 = vmatmul.mubr.bf16.gmra.mxu0 %v364
    %v470 = vpop.f32.mrf.mxu0
    %v471 = vadd.f32 %v386, %v470
    %v472 = vpop.f32.mrf.mxu0
    %v473 = vpop.f32.mrf.mxu0
    %v474 = vpop.f32.mrf.mxu0
    %475 = vdwg.mxu0
    %v476 = vmax.f32 %v471, 0.0
    %v477 = vpack.c.bf16 %v476, %v476
    %v478 = vld [vmem:[%s7] sm:$0xf]
    %v479 = vld [vmem:[%s7 + $0x4] sm:$0xf]
    %v480 = vld [vmem:[%s7 + $0x8] sm:$0xf]
    %v481 = vld [vmem:[%s7 + $0xc] sm:$0xf]
    %v482 = vld [vmem:[%s7 + $0x10] sm:$0xf]
    %v483 = vld [vmem:[%s7 + $0x14] sm:$0xf]
    %v484 = vld [vmem:[%s7 + $0x18] sm:$0xf]
    %v485 = vld [vmem:[%s7 + $0x1c] sm:$0xf]
    %v486 = vld [vmem:[%s7 + $0x20] sm:$0xf]
    %v487 = vld [vmem:[%s7 + $0x24] sm:$0xf]
    %v488 = vld [vmem:[%s7 + $0x28] sm:$0xf]
    %v489 = vld [vmem:[%s7 + $0x2c] sm:$0xf]
    %v490 = vld [vmem:[%s7 + $0x30] sm:$0xf]
    %v491 = vld [vmem:[%s7 + $0x34] sm:$0xf]
    %v492 = vld [vmem:[%s7 + $0x38] sm:$0xf]
    %v493 = vld [vmem:[%s7 + $0x3c] sm:$0xf]
    %v494 = vld [vmem:[#allocation11] sm:$0x1]
    %v496 = vlaneseq
    %v497 = vshrl.u32 %v496, 7
    %v498 = vsub.s32 0, %v497
    %v499 = vrot.slane %v494, %v498
    %v517 = vunpack.c.l.b16 %v478
    %v518 = vunpack.c.l.b16 %v479
    %v519 = vunpack.c.l.b16 %v480
    %v520 = vunpack.c.l.b16 %v481
    %v521 = vunpack.c.l.b16 %v482
    %v522 = vunpack.c.l.b16 %v483
    %v523 = vunpack.c.l.b16 %v484
    %v524 = vunpack.c.l.b16 %v485
    %v525 = vunpack.c.l.b16 %v486
    %v526 = vunpack.c.l.b16 %v487
    %v527 = vunpack.c.l.b16 %v488
    %v528 = vunpack.c.l.b16 %v489
    %v529 = vunpack.c.l.b16 %v490
    %v530 = vunpack.c.l.b16 %v491
    %v531 = vunpack.c.l.b16 %v492
    %v532 = vunpack.c.l.b16 %v493
    %v533 = vpack.c.b16 %v518, %v517
    %v534 = vpack.c.b16 %v520, %v519
    %v535 = vpack.c.b16 %v522, %v521
    %v536 = vpack.c.b16 %v524, %v523
    %v537 = vpack.c.b16 %v526, %v525
    %v538 = vpack.c.b16 %v528, %v527
    %v539 = vpack.c.b16 %v530, %v529
    %v540 = vpack.c.b16 %v532, %v531
    %549 = vmatprep.subr.bf16.mxu0 0
    %550 = vmatpush1.bf16.msra.mxu0 %v540
    %551 = vmatprep.subr.bf16.mxu0 0
    %552 = vmatpush1.bf16.msra.mxu0 %v539
    %553 = vmatprep.subr.bf16.mxu0 0
    %554 = vmatpush1.bf16.msra.mxu0 %v538
    %555 = vmatprep.subr.bf16.mxu0 0
    %556 = vmatpush1.bf16.msra.mxu0 %v537
    %557 = vmatprep.subr.bf16.mxu0 0
    %558 = vmatpush1.bf16.msra.mxu0 %v536
    %559 = vmatprep.subr.bf16.mxu0 0
    %560 = vmatpush1.bf16.msra.mxu0 %v535
    %561 = vmatprep.subr.bf16.mxu0 0
    %562 = vmatpush1.bf16.msra.mxu0 %v534
    %563 = vmatprep.subr.bf16.mxu0 0
    %564 = vmatpush1.bf16.msra.mxu0 %v533
    %565 = vmatprep.subr.bf16.mxu0 0
    %566 = vmatpush2.bf16.msra.mxu0 0
    %567 = vmatprep.subr.bf16.mxu0 0
    %568 = vmatpush2.bf16.msra.mxu0 0
    %569 = vmatprep.subr.bf16.mxu0 0
    %570 = vmatpush2.bf16.msra.mxu0 0
    %571 = vmatprep.subr.bf16.mxu0 0
    %572 = vmatpush2.bf16.msra.mxu0 0
    %573 = vmatprep.subr.bf16.mxu0 0
    %574 = vmatpush2.bf16.msra.mxu0 0
    %575 = vmatprep.subr.bf16.mxu0 0
    %576 = vmatpush2.bf16.msra.mxu0 0
    %577 = vmatprep.subr.bf16.mxu0 0
    %578 = vmatpush2.bf16.msra.mxu0 0
    %579 = vmatprep.subr.bf16.mxu0 0
    %580 = vmatpush2.bf16.msra.mxu0 0
    %581 = vmatprep.mubr.bf16.mxu0 0
    %582 = vmatmul.mubr.bf16.gmra.mxu0 %v477
    %v583 = vpop.f32.mrf.mxu0
    %v584 = vadd.f32 %v499, %v583
    %v585 = vpop.f32.mrf.mxu0
    %v586 = vpop.f32.mrf.mxu0
    %v587 = vpop.f32.mrf.mxu0
    %588 = vdwg.mxu0
    %v590 = vlaneseq
    %v591 = vshrl.u32 %v590, 7
    %v592 = vsub.s32 0, %v591
    %v593 = vrot.slane %v119, %v592
    %v595 = vsub.f32 %v593, %v584
    %v596 = vmax.f32 %v595, 0.0
    %v597 = vand.u32 2147483647, %v595
    %v598 = vsub.f32 0.0, %v597
    %v599 = vmul.f32 %v598, 1.442695
    %v600 = vpow.pop %v599
    %v601 = vadd.f32 %v600, 1.0
    %v602 = vlog2.pop %v601
    %v603 = vmul.f32 %v602, 0.6931472
    %v604 = vadd.f32 %v596, %v603
    %v605 = vsub.f32 %v593, %v604
    %v607 = vlaneseq
    %v608 = vshrl.u32 %v607, 7
    %v609 = vsub.s32 0, %v608
    %v610 = vrot.slane %v120, %v609
    %v612 = vsub.f32 %v605, %v610
    %v613 = vmax.f32 %v612, 0.0
    %v614 = vand.u32 2147483647, %v612
    %v615 = vsub.f32 0.0, %v614
    %v616 = vmul.f32 %v615, 1.442695
    %v617 = vpow.pop %v616
    %v618 = vadd.f32 %v617, 1.0
    %v619 = vlog2.pop %v618
    %v620 = vmul.f32 %v619, 0.6931472
    %v621 = vadd.f32 %v613, %v620
    %v622 = vadd.f32 %v610, %v621
    %v623 = vsel %vm123, %v622, %v584
    %vm624 = vcmask 64512
    %625 = vst.msk [vmem:[#allocation13] sm:$0xff] %vm624, %v623
    %s626 = scalar_lea.vmem %s3, 64
    %v627 = vld [vmem:[%s626] sm:$0xf]
    %v628 = vld [vmem:[%s626 + $0x4] sm:$0xf]
    %v629 = vld [vmem:[%s626 + $0x8] sm:$0xf]
    %v630 = vld [vmem:[%s626 + $0xc] sm:$0xf]
    %v631 = vld [vmem:[%s626 + $0x10] sm:$0xf]
    %v632 = vld [vmem:[%s626 + $0x14] sm:$0xf]
    %v633 = vld [vmem:[%s626 + $0x18] sm:$0xf]
    %v634 = vld [vmem:[%s626 + $0x1c] sm:$0xf]
    %v635 = vld [vmem:[%s626 + $0x20] sm:$0xf]
    %v636 = vld [vmem:[%s626 + $0x24] sm:$0xf]
    %v637 = vld [vmem:[%s626 + $0x28] sm:$0xf]
    %v638 = vld [vmem:[%s626 + $0x2c] sm:$0xf]
    %v639 = vld [vmem:[%s626 + $0x30] sm:$0xf]
    %v640 = vld [vmem:[%s626 + $0x34] sm:$0xf]
    %v641 = vld [vmem:[%s626 + $0x38] sm:$0xf]
    %v642 = vld [vmem:[%s626 + $0x3c] sm:$0xf]
    %s643 = scalar_lea.vmem [#allocation7], 1
    %v644 = vld [vmem:[%s643] sm:$0x1]
    %v646 = vlaneseq
    %v647 = vshrl.u32 %v646, 7
    %v648 = vsub.s32 0, %v647
    %v649 = vrot.slane %v644, %v648
    %v667 = vunpack.c.l.b16 %v627
    %v668 = vunpack.c.l.b16 %v628
    %v669 = vunpack.c.l.b16 %v629
    %v670 = vunpack.c.l.b16 %v630
    %v671 = vunpack.c.l.b16 %v631
    %v672 = vunpack.c.l.b16 %v632
    %v673 = vunpack.c.l.b16 %v633
    %v674 = vunpack.c.l.b16 %v634
    %v675 = vunpack.c.l.b16 %v635
    %v676 = vunpack.c.l.b16 %v636
    %v677 = vunpack.c.l.b16 %v637
    %v678 = vunpack.c.l.b16 %v638
    %v679 = vunpack.c.l.b16 %v639
    %v680 = vunpack.c.l.b16 %v640
    %v681 = vunpack.c.l.b16 %v641
    %v682 = vunpack.c.l.b16 %v642
    %v683 = vpack.c.b16 %v668, %v667
    %v684 = vpack.c.b16 %v670, %v669
    %v685 = vpack.c.b16 %v672, %v671
    %v686 = vpack.c.b16 %v674, %v673
    %v687 = vpack.c.b16 %v676, %v675
    %v688 = vpack.c.b16 %v678, %v677
    %v689 = vpack.c.b16 %v680, %v679
    %v690 = vpack.c.b16 %v682, %v681
    %699 = vmatprep.subr.bf16.mxu0 0
    %700 = vmatpush1.bf16.msra.mxu0 %v690
    %701 = vmatprep.subr.bf16.mxu0 0
    %702 = vmatpush1.bf16.msra.mxu0 %v689
    %703 = vmatprep.subr.bf16.mxu0 0
    %704 = vmatpush1.bf16.msra.mxu0 %v688
    %705 = vmatprep.subr.bf16.mxu0 0
    %706 = vmatpush1.bf16.msra.mxu0 %v687
    %707 = vmatprep.subr.bf16.mxu0 0
    %708 = vmatpush1.bf16.msra.mxu0 %v686
    %709 = vmatprep.subr.bf16.mxu0 0
    %710 = vmatpush1.bf16.msra.mxu0 %v685
    %711 = vmatprep.subr.bf16.mxu0 0
    %712 = vmatpush1.bf16.msra.mxu0 %v684
    %713 = vmatprep.subr.bf16.mxu0 0
    %714 = vmatpush1.bf16.msra.mxu0 %v683
    %715 = vmatprep.subr.bf16.mxu0 0
    %716 = vmatpush2.bf16.msra.mxu0 0
    %717 = vmatprep.subr.bf16.mxu0 0
    %718 = vmatpush2.bf16.msra.mxu0 0
    %719 = vmatprep.subr.bf16.mxu0 0
    %720 = vmatpush2.bf16.msra.mxu0 0
    %721 = vmatprep.subr.bf16.mxu0 0
    %722 = vmatpush2.bf16.msra.mxu0 0
    %723 = vmatprep.subr.bf16.mxu0 0
    %724 = vmatpush2.bf16.msra.mxu0 0
    %725 = vmatprep.subr.bf16.mxu0 0
    %726 = vmatpush2.bf16.msra.mxu0 0
    %727 = vmatprep.subr.bf16.mxu0 0
    %728 = vmatpush2.bf16.msra.mxu0 0
    %729 = vmatprep.subr.bf16.mxu0 0
    %730 = vmatpush2.bf16.msra.mxu0 0
    %731 = vmatprep.mubr.bf16.mxu0 0
    %732 = vmatmul.mubr.bf16.gmra.mxu0 %v250
    %v733 = vpop.f32.mrf.mxu0
    %v734 = vadd.f32 %v649, %v733
    %v735 = vpop.f32.mrf.mxu0
    %v736 = vpop.f32.mrf.mxu0
    %v737 = vpop.f32.mrf.mxu0
    %738 = vdwg.mxu0
    %v739 = vmax.f32 %v734, 0.0
    %v740 = vpack.c.bf16 %v739, %v739
    %s741 = scalar_lea.vmem [#allocation8], 64
    %v742 = vld [vmem:[%s741] sm:$0xf]
    %v743 = vld [vmem:[%s741 + $0x4] sm:$0xf]
    %v744 = vld [vmem:[%s741 + $0x8] sm:$0xf]
    %v745 = vld [vmem:[%s741 + $0xc] sm:$0xf]
    %v746 = vld [vmem:[%s741 + $0x10] sm:$0xf]
    %v747 = vld [vmem:[%s741 + $0x14] sm:$0xf]
    %v748 = vld [vmem:[%s741 + $0x18] sm:$0xf]
    %v749 = vld [vmem:[%s741 + $0x1c] sm:$0xf]
    %v750 = vld [vmem:[%s741 + $0x20] sm:$0xf]
    %v751 = vld [vmem:[%s741 + $0x24] sm:$0xf]
    %v752 = vld [vmem:[%s741 + $0x28] sm:$0xf]
    %v753 = vld [vmem:[%s741 + $0x2c] sm:$0xf]
    %v754 = vld [vmem:[%s741 + $0x30] sm:$0xf]
    %v755 = vld [vmem:[%s741 + $0x34] sm:$0xf]
    %v756 = vld [vmem:[%s741 + $0x38] sm:$0xf]
    %v757 = vld [vmem:[%s741 + $0x3c] sm:$0xf]
    %s758 = scalar_lea.vmem [#allocation10], 1
    %v759 = vld [vmem:[%s758] sm:$0x1]
    %v761 = vlaneseq
    %v762 = vshrl.u32 %v761, 7
    %v763 = vsub.s32 0, %v762
    %v764 = vrot.slane %v759, %v763
    %v782 = vunpack.c.l.b16 %v742
    %v783 = vunpack.c.l.b16 %v743
    %v784 = vunpack.c.l.b16 %v744
    %v785 = vunpack.c.l.b16 %v745
    %v786 = vunpack.c.l.b16 %v746
    %v787 = vunpack.c.l.b16 %v747
    %v788 = vunpack.c.l.b16 %v748
    %v789 = vunpack.c.l.b16 %v749
    %v790 = vunpack.c.l.b16 %v750
    %v791 = vunpack.c.l.b16 %v751
    %v792 = vunpack.c.l.b16 %v752
    %v793 = vunpack.c.l.b16 %v753
    %v794 = vunpack.c.l.b16 %v754
    %v795 = vunpack.c.l.b16 %v755
    %v796 = vunpack.c.l.b16 %v756
    %v797 = vunpack.c.l.b16 %v757
    %v798 = vpack.c.b16 %v783, %v782
    %v799 = vpack.c.b16 %v785, %v784
    %v800 = vpack.c.b16 %v787, %v786
    %v801 = vpack.c.b16 %v789, %v788
    %v802 = vpack.c.b16 %v791, %v790
    %v803 = vpack.c.b16 %v793, %v792
    %v804 = vpack.c.b16 %v795, %v794
    %v805 = vpack.c.b16 %v797, %v796
    %814 = vmatprep.subr.bf16.mxu0 0
    %815 = vmatpush1.bf16.msra.mxu0 %v805
    %816 = vmatprep.subr.bf16.mxu0 0
    %817 = vmatpush1.bf16.msra.mxu0 %v804
    %818 = vmatprep.subr.bf16.mxu0 0
    %819 = vmatpush1.bf16.msra.mxu0 %v803
    %820 = vmatprep.subr.bf16.mxu0 0
    %821 = vmatpush1.bf16.msra.mxu0 %v802
    %822 = vmatprep.subr.bf16.mxu0 0
    %823 = vmatpush1.bf16.msra.mxu0 %v801
    %824 = vmatprep.subr.bf16.mxu0 0
    %825 = vmatpush1.bf16.msra.mxu0 %v800
    %826 = vmatprep.subr.bf16.mxu0 0
    %827 = vmatpush1.bf16.msra.mxu0 %v799
    %828 = vmatprep.subr.bf16.mxu0 0
    %829 = vmatpush1.bf16.msra.mxu0 %v798
    %830 = vmatprep.subr.bf16.mxu0 0
    %831 = vmatpush2.bf16.msra.mxu0 0
    %832 = vmatprep.subr.bf16.mxu0 0
    %833 = vmatpush2.bf16.msra.mxu0 0
    %834 = vmatprep.subr.bf16.mxu0 0
    %835 = vmatpush2.bf16.msra.mxu0 0
    %836 = vmatprep.subr.bf16.mxu0 0
    %837 = vmatpush2.bf16.msra.mxu0 0
    %838 = vmatprep.subr.bf16.mxu0 0
    %839 = vmatpush2.bf16.msra.mxu0 0
    %840 = vmatprep.subr.bf16.mxu0 0
    %841 = vmatpush2.bf16.msra.mxu0 0
    %842 = vmatprep.subr.bf16.mxu0 0
    %843 = vmatpush2.bf16.msra.mxu0 0
    %844 = vmatprep.subr.bf16.mxu0 0
    %845 = vmatpush2.bf16.msra.mxu0 0
    %846 = vmatprep.mubr.bf16.mxu0 0
    %847 = vmatmul.mubr.bf16.gmra.mxu0 %v740
    %v848 = vpop.f32.mrf.mxu0
    %v849 = vadd.f32 %v764, %v848
    %v850 = vpop.f32.mrf.mxu0
    %v851 = vpop.f32.mrf.mxu0
    %v852 = vpop.f32.mrf.mxu0
    %853 = vdwg.mxu0
    %v854 = vmax.f32 %v849, 0.0
    %v855 = vpack.c.bf16 %v854, %v854
    %s856 = scalar_lea.vmem %s7, 64
    %v857 = vld [vmem:[%s856] sm:$0xf]
    %v858 = vld [vmem:[%s856 + $0x4] sm:$0xf]
    %v859 = vld [vmem:[%s856 + $0x8] sm:$0xf]
    %v860 = vld [vmem:[%s856 + $0xc] sm:$0xf]
    %v861 = vld [vmem:[%s856 + $0x10] sm:$0xf]
    %v862 = vld [vmem:[%s856 + $0x14] sm:$0xf]
    %v863 = vld [vmem:[%s856 + $0x18] sm:$0xf]
    %v864 = vld [vmem:[%s856 + $0x1c] sm:$0xf]
    %v865 = vld [vmem:[%s856 + $0x20] sm:$0xf]
    %v866 = vld [vmem:[%s856 + $0x24] sm:$0xf]
    %v867 = vld [vmem:[%s856 + $0x28] sm:$0xf]
    %v868 = vld [vmem:[%s856 + $0x2c] sm:$0xf]
    %v869 = vld [vmem:[%s856 + $0x30] sm:$0xf]
    %v870 = vld [vmem:[%s856 + $0x34] sm:$0xf]
    %v871 = vld [vmem:[%s856 + $0x38] sm:$0xf]
    %v872 = vld [vmem:[%s856 + $0x3c] sm:$0xf]
    %s873 = scalar_lea.vmem [#allocation11], 1
    %v874 = vld [vmem:[%s873] sm:$0x1]
    %v876 = vlaneseq
    %v877 = vshrl.u32 %v876, 7
    %v878 = vsub.s32 0, %v877
    %v879 = vrot.slane %v874, %v878
    %v897 = vunpack.c.l.b16 %v857
    %v898 = vunpack.c.l.b16 %v858
    %v899 = vunpack.c.l.b16 %v859
    %v900 = vunpack.c.l.b16 %v860
    %v901 = vunpack.c.l.b16 %v861
    %v902 = vunpack.c.l.b16 %v862
    %v903 = vunpack.c.l.b16 %v863
    %v904 = vunpack.c.l.b16 %v864
    %v905 = vunpack.c.l.b16 %v865
    %v906 = vunpack.c.l.b16 %v866
    %v907 = vunpack.c.l.b16 %v867
    %v908 = vunpack.c.l.b16 %v868
    %v909 = vunpack.c.l.b16 %v869
    %v910 = vunpack.c.l.b16 %v870
    %v911 = vunpack.c.l.b16 %v871
    %v912 = vunpack.c.l.b16 %v872
    %v913 = vpack.c.b16 %v898, %v897
    %v914 = vpack.c.b16 %v900, %v899
    %v915 = vpack.c.b16 %v902, %v901
    %v916 = vpack.c.b16 %v904, %v903
    %v917 = vpack.c.b16 %v906, %v905
    %v918 = vpack.c.b16 %v908, %v907
    %v919 = vpack.c.b16 %v910, %v909
    %v920 = vpack.c.b16 %v912, %v911
    %929 = vmatprep.subr.bf16.mxu0 0
    %930 = vmatpush1.bf16.msra.mxu0 %v920
    %931 = vmatprep.subr.bf16.mxu0 0
    %932 = vmatpush1.bf16.msra.mxu0 %v919
    %933 = vmatprep.subr.bf16.mxu0 0
    %934 = vmatpush1.bf16.msra.mxu0 %v918
    %935 = vmatprep.subr.bf16.mxu0 0
    %936 = vmatpush1.bf16.msra.mxu0 %v917
    %937 = vmatprep.subr.bf16.mxu0 0
    %938 = vmatpush1.bf16.msra.mxu0 %v916
    %939 = vmatprep.subr.bf16.mxu0 0
    %940 = vmatpush1.bf16.msra.mxu0 %v915
    %941 = vmatprep.subr.bf16.mxu0 0
    %942 = vmatpush1.bf16.msra.mxu0 %v914
    %943 = vmatprep.subr.bf16.mxu0 0
    %944 = vmatpush1.bf16.msra.mxu0 %v913
    %945 = vmatprep.subr.bf16.mxu0 0
    %946 = vmatpush2.bf16.msra.mxu0 0
    %947 = vmatprep.subr.bf16.mxu0 0
    %948 = vmatpush2.bf16.msra.mxu0 0
    %949 = vmatprep.subr.bf16.mxu0 0
    %950 = vmatpush2.bf16.msra.mxu0 0
    %951 = vmatprep.subr.bf16.mxu0 0
    %952 = vmatpush2.bf16.msra.mxu0 0
    %953 = vmatprep.subr.bf16.mxu0 0
    %954 = vmatpush2.bf16.msra.mxu0 0
    %955 = vmatprep.subr.bf16.mxu0 0
    %956 = vmatpush2.bf16.msra.mxu0 0
    %957 = vmatprep.subr.bf16.mxu0 0
    %958 = vmatpush2.bf16.msra.mxu0 0
    %959 = vmatprep.subr.bf16.mxu0 0
    %960 = vmatpush2.bf16.msra.mxu0 0
    %961 = vmatprep.mubr.bf16.mxu0 0
    %962 = vmatmul.mubr.bf16.gmra.mxu0 %v855
    %v963 = vpop.f32.mrf.mxu0
    %v964 = vadd.f32 %v879, %v963
    %v965 = vpop.f32.mrf.mxu0
    %v966 = vpop.f32.mrf.mxu0
    %v967 = vpop.f32.mrf.mxu0
    %968 = vdwg.mxu0
    %v969 = vsub.f32 %v593, %v964
    %v970 = vmax.f32 %v969, 0.0
    %v971 = vand.u32 2147483647, %v969
    %v972 = vsub.f32 0.0, %v971
    %v973 = vmul.f32 %v972, 1.442695
    %v974 = vpow.pop %v973
    %v975 = vadd.f32 %v974, 1.0
    %v976 = vlog2.pop %v975
    %v977 = vmul.f32 %v976, 0.6931472
    %v978 = vadd.f32 %v970, %v977
    %v979 = vsub.f32 %v593, %v978
    %v980 = vsub.f32 %v979, %v610
    %v981 = vmax.f32 %v980, 0.0
    %v982 = vand.u32 2147483647, %v980
    %v983 = vsub.f32 0.0, %v982
    %v984 = vmul.f32 %v983, 1.442695
    %v985 = vpow.pop %v984
    %v986 = vadd.f32 %v985, 1.0
    %v987 = vlog2.pop %v986
    %v988 = vmul.f32 %v987, 0.6931472
    %v989 = vadd.f32 %v981, %v988
    %v990 = vadd.f32 %v610, %v989
    %v991 = vsel %vm123, %v990, %v964
    %993 = vrot.lane.b32.xlu0 %v991, 8
    %v994 = vpop.permute.xlu0 %993
    %vm996 = vcmask 130112
    %997 = vst.msk [vmem:[#allocation13] sm:$0xff] %vm996, %v994
    %s998 = scalar_lea.vmem %s3, 128
    %v999 = vld [vmem:[%s998] sm:$0xf]
    %v1000 = vld [vmem:[%s998 + $0x4] sm:$0xf]
    %v1001 = vld [vmem:[%s998 + $0x8] sm:$0xf]
    %v1002 = vld [vmem:[%s998 + $0xc] sm:$0xf]
    %v1003 = vld [vmem:[%s998 + $0x10] sm:$0xf]
    %v1004 = vld [vmem:[%s998 + $0x14] sm:$0xf]
    %v1005 = vld [vmem:[%s998 + $0x18] sm:$0xf]
    %v1006 = vld [vmem:[%s998 + $0x1c] sm:$0xf]
    %v1007 = vld [vmem:[%s998 + $0x20] sm:$0xf]
    %v1008 = vld [vmem:[%s998 + $0x24] sm:$0xf]
    %v1009 = vld [vmem:[%s998 + $0x28] sm:$0xf]
    %v1010 = vld [vmem:[%s998 + $0x2c] sm:$0xf]
    %v1011 = vld [vmem:[%s998 + $0x30] sm:$0xf]
    %v1012 = vld [vmem:[%s998 + $0x34] sm:$0xf]
    %v1013 = vld [vmem:[%s998 + $0x38] sm:$0xf]
    %v1014 = vld [vmem:[%s998 + $0x3c] sm:$0xf]
    %s1015 = scalar_lea.vmem [#allocation7], 2
    %v1016 = vld [vmem:[%s1015] sm:$0x1]
    %v1018 = vlaneseq
    %v1019 = vshrl.u32 %v1018, 7
    %v1020 = vsub.s32 0, %v1019
    %v1021 = vrot.slane %v1016, %v1020
    %v1039 = vunpack.c.l.b16 %v999
    %v1040 = vunpack.c.l.b16 %v1000
    %v1041 = vunpack.c.l.b16 %v1001
    %v1042 = vunpack.c.l.b16 %v1002
    %v1043 = vunpack.c.l.b16 %v1003
    %v1044 = vunpack.c.l.b16 %v1004
    %v1045 = vunpack.c.l.b16 %v1005
    %v1046 = vunpack.c.l.b16 %v1006
    %v1047 = vunpack.c.l.b16 %v1007
    %v1048 = vunpack.c.l.b16 %v1008
    %v1049 = vunpack.c.l.b16 %v1009
    %v1050 = vunpack.c.l.b16 %v1010
    %v1051 = vunpack.c.l.b16 %v1011
    %v1052 = vunpack.c.l.b16 %v1012
    %v1053 = vunpack.c.l.b16 %v1013
    %v1054 = vunpack.c.l.b16 %v1014
    %v1055 = vpack.c.b16 %v1040, %v1039
    %v1056 = vpack.c.b16 %v1042, %v1041
    %v1057 = vpack.c.b16 %v1044, %v1043
    %v1058 = vpack.c.b16 %v1046, %v1045
    %v1059 = vpack.c.b16 %v1048, %v1047
    %v1060 = vpack.c.b16 %v1050, %v1049
    %v1061 = vpack.c.b16 %v1052, %v1051
    %v1062 = vpack.c.b16 %v1054, %v1053
    %1071 = vmatprep.subr.bf16.mxu0 0
    %1072 = vmatpush1.bf16.msra.mxu0 %v1062
    %1073 = vmatprep.subr.bf16.mxu0 0
    %1074 = vmatpush1.bf16.msra.mxu0 %v1061
    %1075 = vmatprep.subr.bf16.mxu0 0
    %1076 = vmatpush1.bf16.msra.mxu0 %v1060
    %1077 = vmatprep.subr.bf16.mxu0 0
    %1078 = vmatpush1.bf16.msra.mxu0 %v1059
    %1079 = vmatprep.subr.bf16.mxu0 0
    %1080 = vmatpush1.bf16.msra.mxu0 %v1058
    %1081 = vmatprep.subr.bf16.mxu0 0
    %1082 = vmatpush1.bf16.msra.mxu0 %v1057
    %1083 = vmatprep.subr.bf16.mxu0 0
    %1084 = vmatpush1.bf16.msra.mxu0 %v1056
    %1085 = vmatprep.subr.bf16.mxu0 0
    %1086 = vmatpush1.bf16.msra.mxu0 %v1055
    %1087 = vmatprep.subr.bf16.mxu0 0
    %1088 = vmatpush2.bf16.msra.mxu0 0
    %1089 = vmatprep.subr.bf16.mxu0 0
    %1090 = vmatpush2.bf16.msra.mxu0 0
    %1091 = vmatprep.subr.bf16.mxu0 0
    %1092 = vmatpush2.bf16.msra.mxu0 0
    %1093 = vmatprep.subr.bf16.mxu0 0
    %1094 = vmatpush2.bf16.msra.mxu0 0
    %1095 = vmatprep.subr.bf16.mxu0 0
    %1096 = vmatpush2.bf16.msra.mxu0 0
    %1097 = vmatprep.subr.bf16.mxu0 0
    %1098 = vmatpush2.bf16.msra.mxu0 0
    %1099 = vmatprep.subr.bf16.mxu0 0
    %1100 = vmatpush2.bf16.msra.mxu0 0
    %1101 = vmatprep.subr.bf16.mxu0 0
    %1102 = vmatpush2.bf16.msra.mxu0 0
    %1103 = vmatprep.mubr.bf16.mxu0 0
    %1104 = vmatmul.mubr.bf16.gmra.mxu0 %v251
    %v1105 = vpop.f32.mrf.mxu0
    %v1106 = vadd.f32 %v1021, %v1105
    %v1107 = vpop.f32.mrf.mxu0
    %v1108 = vpop.f32.mrf.mxu0
    %v1109 = vpop.f32.mrf.mxu0
    %1110 = vdwg.mxu0
    %v1111 = vmax.f32 %v1106, 0.0
    %v1112 = vpack.c.bf16 %v1111, %v1111
    %s1113 = scalar_lea.vmem [#allocation8], 128
    %v1114 = vld [vmem:[%s1113] sm:$0xf]
    %v1115 = vld [vmem:[%s1113 + $0x4] sm:$0xf]
    %v1116 = vld [vmem:[%s1113 + $0x8] sm:$0xf]
    %v1117 = vld [vmem:[%s1113 + $0xc] sm:$0xf]
    %v1118 = vld [vmem:[%s1113 + $0x10] sm:$0xf]
    %v1119 = vld [vmem:[%s1113 + $0x14] sm:$0xf]
    %v1120 = vld [vmem:[%s1113 + $0x18] sm:$0xf]
    %v1121 = vld [vmem:[%s1113 + $0x1c] sm:$0xf]
    %v1122 = vld [vmem:[%s1113 + $0x20] sm:$0xf]
    %v1123 = vld [vmem:[%s1113 + $0x24] sm:$0xf]
    %v1124 = vld [vmem:[%s1113 + $0x28] sm:$0xf]
    %v1125 = vld [vmem:[%s1113 + $0x2c] sm:$0xf]
    %v1126 = vld [vmem:[%s1113 + $0x30] sm:$0xf]
    %v1127 = vld [vmem:[%s1113 + $0x34] sm:$0xf]
    %v1128 = vld [vmem:[%s1113 + $0x38] sm:$0xf]
    %v1129 = vld [vmem:[%s1113 + $0x3c] sm:$0xf]
    %s1130 = scalar_lea.vmem [#allocation10], 2
    %v1131 = vld [vmem:[%s1130] sm:$0x1]
    %v1133 = vlaneseq
    %v1134 = vshrl.u32 %v1133, 7
    %v1135 = vsub.s32 0, %v1134
    %v1136 = vrot.slane %v1131, %v1135
    %v1154 = vunpack.c.l.b16 %v1114
    %v1155 = vunpack.c.l.b16 %v1115
    %v1156 = vunpack.c.l.b16 %v1116
    %v1157 = vunpack.c.l.b16 %v1117
    %v1158 = vunpack.c.l.b16 %v1118
    %v1159 = vunpack.c.l.b16 %v1119
    %v1160 = vunpack.c.l.b16 %v1120
    %v1161 = vunpack.c.l.b16 %v1121
    %v1162 = vunpack.c.l.b16 %v1122
    %v1163 = vunpack.c.l.b16 %v1123
    %v1164 = vunpack.c.l.b16 %v1124
    %v1165 = vunpack.c.l.b16 %v1125
    %v1166 = vunpack.c.l.b16 %v1126
    %v1167 = vunpack.c.l.b16 %v1127
    %v1168 = vunpack.c.l.b16 %v1128
    %v1169 = vunpack.c.l.b16 %v1129
    %v1170 = vpack.c.b16 %v1155, %v1154
    %v1171 = vpack.c.b16 %v1157, %v1156
    %v1172 = vpack.c.b16 %v1159, %v1158
    %v1173 = vpack.c.b16 %v1161, %v1160
    %v1174 = vpack.c.b16 %v1163, %v1162
    %v1175 = vpack.c.b16 %v1165, %v1164
    %v1176 = vpack.c.b16 %v1167, %v1166
    %v1177 = vpack.c.b16 %v1169, %v1168
    %1186 = vmatprep.subr.bf16.mxu0 0
    %1187 = vmatpush1.bf16.msra.mxu0 %v1177
    %1188 = vmatprep.subr.bf16.mxu0 0
    %1189 = vmatpush1.bf16.msra.mxu0 %v1176
    %1190 = vmatprep.subr.bf16.mxu0 0
    %1191 = vmatpush1.bf16.msra.mxu0 %v1175
    %1192 = vmatprep.subr.bf16.mxu0 0
    %1193 = vmatpush1.bf16.msra.mxu0 %v1174
    %1194 = vmatprep.subr.bf16.mxu0 0
    %1195 = vmatpush1.bf16.msra.mxu0 %v1173
    %1196 = vmatprep.subr.bf16.mxu0 0
    %1197 = vmatpush1.bf16.msra.mxu0 %v1172
    %1198 = vmatprep.subr.bf16.mxu0 0
    %1199 = vmatpush1.bf16.msra.mxu0 %v1171
    %1200 = vmatprep.subr.bf16.mxu0 0
    %1201 = vmatpush1.bf16.msra.mxu0 %v1170
    %1202 = vmatprep.subr.bf16.mxu0 0
    %1203 = vmatpush2.bf16.msra.mxu0 0
    %1204 = vmatprep.subr.bf16.mxu0 0
    %1205 = vmatpush2.bf16.msra.mxu0 0
    %1206 = vmatprep.subr.bf16.mxu0 0
    %1207 = vmatpush2.bf16.msra.mxu0 0
    %1208 = vmatprep.subr.bf16.mxu0 0
    %1209 = vmatpush2.bf16.msra.mxu0 0
    %1210 = vmatprep.subr.bf16.mxu0 0
    %1211 = vmatpush2.bf16.msra.mxu0 0
    %1212 = vmatprep.subr.bf16.mxu0 0
    %1213 = vmatpush2.bf16.msra.mxu0 0
    %1214 = vmatprep.subr.bf16.mxu0 0
    %1215 = vmatpush2.bf16.msra.mxu0 0
    %1216 = vmatprep.subr.bf16.mxu0 0
    %1217 = vmatpush2.bf16.msra.mxu0 0
    %1218 = vmatprep.mubr.bf16.mxu0 0
    %1219 = vmatmul.mubr.bf16.gmra.mxu0 %v1112
    %v1220 = vpop.f32.mrf.mxu0
    %v1221 = vadd.f32 %v1136, %v1220
    %v1222 = vpop.f32.mrf.mxu0
    %v1223 = vpop.f32.mrf.mxu0
    %v1224 = vpop.f32.mrf.mxu0
    %1225 = vdwg.mxu0
    %v1226 = vmax.f32 %v1221, 0.0
    %v1227 = vpack.c.bf16 %v1226, %v1226
    %s1228 = scalar_lea.vmem %s7, 128
    %v1229 = vld [vmem:[%s1228] sm:$0xf]
    %v1230 = vld [vmem:[%s1228 + $0x4] sm:$0xf]
    %v1231 = vld [vmem:[%s1228 + $0x8] sm:$0xf]
    %v1232 = vld [vmem:[%s1228 + $0xc] sm:$0xf]
    %v1233 = vld [vmem:[%s1228 + $0x10] sm:$0xf]
    %v1234 = vld [vmem:[%s1228 + $0x14] sm:$0xf]
    %v1235 = vld [vmem:[%s1228 + $0x18] sm:$0xf]
    %v1236 = vld [vmem:[%s1228 + $0x1c] sm:$0xf]
    %v1237 = vld [vmem:[%s1228 + $0x20] sm:$0xf]
    %v1238 = vld [vmem:[%s1228 + $0x24] sm:$0xf]
    %v1239 = vld [vmem:[%s1228 + $0x28] sm:$0xf]
    %v1240 = vld [vmem:[%s1228 + $0x2c] sm:$0xf]
    %v1241 = vld [vmem:[%s1228 + $0x30] sm:$0xf]
    %v1242 = vld [vmem:[%s1228 + $0x34] sm:$0xf]
    %v1243 = vld [vmem:[%s1228 + $0x38] sm:$0xf]
    %v1244 = vld [vmem:[%s1228 + $0x3c] sm:$0xf]
    %s1245 = scalar_lea.vmem [#allocation11], 2
    %v1246 = vld [vmem:[%s1245] sm:$0x1]
    %v1248 = vlaneseq
    %v1249 = vshrl.u32 %v1248, 7
    %v1250 = vsub.s32 0, %v1249
    %v1251 = vrot.slane %v1246, %v1250
    %v1269 = vunpack.c.l.b16 %v1229
    %v1270 = vunpack.c.l.b16 %v1230
    %v1271 = vunpack.c.l.b16 %v1231
    %v1272 = vunpack.c.l.b16 %v1232
    %v1273 = vunpack.c.l.b16 %v1233
    %v1274 = vunpack.c.l.b16 %v1234
    %v1275 = vunpack.c.l.b16 %v1235
    %v1276 = vunpack.c.l.b16 %v1236
    %v1277 = vunpack.c.l.b16 %v1237
    %v1278 = vunpack.c.l.b16 %v1238
    %v1279 = vunpack.c.l.b16 %v1239
    %v1280 = vunpack.c.l.b16 %v1240
    %v1281 = vunpack.c.l.b16 %v1241
    %v1282 = vunpack.c.l.b16 %v1242
    %v1283 = vunpack.c.l.b16 %v1243
    %v1284 = vunpack.c.l.b16 %v1244
    %v1285 = vpack.c.b16 %v1270, %v1269
    %v1286 = vpack.c.b16 %v1272, %v1271
    %v1287 = vpack.c.b16 %v1274, %v1273
    %v1288 = vpack.c.b16 %v1276, %v1275
    %v1289 = vpack.c.b16 %v1278, %v1277
    %v1290 = vpack.c.b16 %v1280, %v1279
    %v1291 = vpack.c.b16 %v1282, %v1281
    %v1292 = vpack.c.b16 %v1284, %v1283
    %1301 = vmatprep.subr.bf16.mxu0 0
    %1302 = vmatpush1.bf16.msra.mxu0 %v1292
    %1303 = vmatprep.subr.bf16.mxu0 0
    %1304 = vmatpush1.bf16.msra.mxu0 %v1291
    %1305 = vmatprep.subr.bf16.mxu0 0
    %1306 = vmatpush1.bf16.msra.mxu0 %v1290
    %1307 = vmatprep.subr.bf16.mxu0 0
    %1308 = vmatpush1.bf16.msra.mxu0 %v1289
    %1309 = vmatprep.subr.bf16.mxu0 0
    %1310 = vmatpush1.bf16.msra.mxu0 %v1288
    %1311 = vmatprep.subr.bf16.mxu0 0
    %1312 = vmatpush1.bf16.msra.mxu0 %v1287
    %1313 = vmatprep.subr.bf16.mxu0 0
    %1314 = vmatpush1.bf16.msra.mxu0 %v1286
    %1315 = vmatprep.subr.bf16.mxu0 0
    %1316 = vmatpush1.bf16.msra.mxu0 %v1285
    %1317 = vmatprep.subr.bf16.mxu0 0
    %1318 = vmatpush2.bf16.msra.mxu0 0
    %1319 = vmatprep.subr.bf16.mxu0 0
    %1320 = vmatpush2.bf16.msra.mxu0 0
    %1321 = vmatprep.subr.bf16.mxu0 0
    %1322 = vmatpush2.bf16.msra.mxu0 0
    %1323 = vmatprep.subr.bf16.mxu0 0
    %1324 = vmatpush2.bf16.msra.mxu0 0
    %1325 = vmatprep.subr.bf16.mxu0 0
    %1326 = vmatpush2.bf16.msra.mxu0 0
    %1327 = vmatprep.subr.bf16.mxu0 0
    %1328 = vmatpush2.bf16.msra.mxu0 0
    %1329 = vmatprep.subr.bf16.mxu0 0
    %1330 = vmatpush2.bf16.msra.mxu0 0
    %1331 = vmatprep.subr.bf16.mxu0 0
    %1332 = vmatpush2.bf16.msra.mxu0 0
    %1333 = vmatprep.mubr.bf16.mxu0 0
    %1334 = vmatmul.mubr.bf16.gmra.mxu0 %v1227
    %v1335 = vpop.f32.mrf.mxu0
    %v1336 = vadd.f32 %v1251, %v1335
    %v1337 = vpop.f32.mrf.mxu0
    %v1338 = vpop.f32.mrf.mxu0
    %v1339 = vpop.f32.mrf.mxu0
    %1340 = vdwg.mxu0
    %v1341 = vsub.f32 %v593, %v1336
    %v1342 = vmax.f32 %v1341, 0.0
    %v1343 = vand.u32 2147483647, %v1341
    %v1344 = vsub.f32 0.0, %v1343
    %v1345 = vmul.f32 %v1344, 1.442695
    %v1346 = vpow.pop %v1345
    %v1347 = vadd.f32 %v1346, 1.0
    %v1348 = vlog2.pop %v1347
    %v1349 = vmul.f32 %v1348, 0.6931472
    %v1350 = vadd.f32 %v1342, %v1349
    %v1351 = vsub.f32 %v593, %v1350
    %v1352 = vsub.f32 %v1351, %v610
    %v1353 = vmax.f32 %v1352, 0.0
    %v1354 = vand.u32 2147483647, %v1352
    %v1355 = vsub.f32 0.0, %v1354
    %v1356 = vmul.f32 %v1355, 1.442695
    %v1357 = vpow.pop %v1356
    %v1358 = vadd.f32 %v1357, 1.0
    %v1359 = vlog2.pop %v1358
    %v1360 = vmul.f32 %v1359, 0.6931472
    %v1361 = vadd.f32 %v1353, %v1360
    %v1362 = vadd.f32 %v610, %v1361
    %v1363 = vsel %vm123, %v1362, %v1336
    %1365 = vrot.lane.b32.xlu0 %v1363, 16
    %v1366 = vpop.permute.xlu0 %1365
    %vm1368 = vcmask 195712
    %1369 = vst.msk [vmem:[#allocation13] sm:$0xff] %vm1368, %v1366
    // Predicated region
    $region70: #{tpu_custom_call.1} parent=1 // pred_check
      _
    $region71: #{tpu_custom_call.1} parent=1 // pred_check_branch
      %1371 = sbr.rel (0) target = $region73
    $region72: #{tpu_custom_call.1} parent=1 // pred_region
      %s1373 = ssub.s32 128, 128
      %1374 = vsyncadd [#allocation4], %s1373
      %s1376 = sshll.u32 [#allocation13], 4
      %s1377 = int_to_ptr.vmem [resolvable:$true] %s1376
      %1379 = dma.vmem_to_hbm [thread:$0]  %s1377, 128, %s11, [#allocation4]
    $region73: #{tpu_custom_call.1} parent=1 // pred_fallthru
      _
    // Predicated region
    $region74: #{tpu_custom_call.1} parent=1 // pred_check
      _
    $region75: #{tpu_custom_call.1} parent=1 // pred_check_branch
      %1381 = sbr.rel (0) target = $region77
    $region76: #{tpu_custom_call.1} parent=1 // pred_region
      %1382 = dma.done [#allocation4], 128
    $region77: #{tpu_custom_call.1} parent=1 // pred_fallthru
      _
    %1383 = vsyncpa [#allocation3], 1
    %1384 = vsyncpa [#allocation6], 1
    %1385 = vsyncpa [#allocation9], 1
    %1386 = vsyncpa [#allocation12], 1
    %1387 = vsyncpa [#allocation4], 1

</llo_original>
